<compile_context>
chip_gen: v5e
topology: v5e:2x2
jax: 0.10.0
libtpu: 0.0.40
codegen_flags: <defaults>
</compile_context>

<pallas_src>
import functools

import jax
import jax.numpy as jnp
from jax import lax
from jax.experimental import pallas as pl
from jax.experimental.pallas import tpu as pltpu

F32 = jnp.float32


def _early_fusion_kernel(x_ref, wd_ref, bc_ref, wl1_ref, bl1_ref,
                         wl2_ref, bl2_ref, wm1_ref, bm1_ref, wm2_ref, bm2_ref,
                         wh_ref, bh_ref, out_ref, *, bt, s, mm_dtype):
    """One grid step = bt samples.

    x_ref  : (bt*s, 4*c4)  lane-dense conv patches (4 space-to-depth windows)
    wd_ref : (4*c4, 64)    conv taps regrouped per 2x2 window (invalid taps 0)
    wh_ref : (512, cpad)   wm3 @ wo folded head (lane-dense, cpad = 128-padded)
    out_ref: (bt, cpad)    class logits
    """
    # --- conv(3x3, stride 2, pad 1) + folded BN + ReLU: ONE matmul ----------
    h = jnp.dot(x_ref[...], wd_ref[...], preferred_element_type=F32) + bc_ref[...]
    h = jnp.maximum(h, 0.0)                                 # (bt*s, 64) f32

    # --- local_fc: two (1x1 conv + folded BN + ReLU) == per-pixel matmuls ---
    h = jnp.maximum(jnp.dot(h.astype(mm_dtype), wl1_ref[...],
                            preferred_element_type=F32) + bl1_ref[...], 0.0)
    h = jnp.maximum(jnp.dot(h.astype(mm_dtype), wl2_ref[...],
                            preferred_element_type=F32) + bl2_ref[...], 0.0)

    # --- AdaptiveAvgPool2d(1): per-sample spatial mean ----------------------
    g = jnp.mean(h.reshape(bt, s, 64), axis=1)              # (bt, 64)

    # --- MLP; Linear(512,64) folded into the classifier head ---------------
    z = jnp.maximum(jnp.dot(g.astype(mm_dtype), wm1_ref[...],
                            preferred_element_type=F32) + bm1_ref[...], 0.0)
    z = jnp.maximum(jnp.dot(z.astype(mm_dtype), wm2_ref[...],
                            preferred_element_type=F32) + bm2_ref[...], 0.0)
    out_ref[...] = jnp.dot(z.astype(mm_dtype), wh_ref[...],
                           preferred_element_type=F32) + bh_ref[...]
    # TODO(synk): nn.Dropout(0.2) is identity here (eval-mode semantics only).


def _round_up(n, m):
    return ((n + m - 1) // m) * m


def _pick_bt(batch, bt_max=128):
    """Batch tile: fill MXU rows, but keep >=2 grid steps when batch allows
    (v7x has 2 TensorCores sharded via dimension_semantics=('parallel',))."""
    b8 = _round_up(max(batch, 1), 8)
    bt = min(bt_max, b8)
    if b8 > 8 and (b8 + bt - 1) // bt < 2:
        bt = _round_up((b8 + 1) // 2, 8)
    return bt


def _space_to_depth(x_nhwc):
    """Zero-pad by 1 (conv padding), pad H/W to even, 2x2 space-to-depth.

    std[b, i, j, (a*2 + b2)*C + c] = xpad[b, 2*i + a, 2*j + b2, c]
    """
    B, H, W, C = x_nhwc.shape
    hp, wp = H + 2, W + 2
    hpe, wpe = hp + (hp % 2), wp + (wp % 2)
    xpad = jnp.pad(x_nhwc, ((0, 0), (1, hpe - H - 1), (1, wpe - W - 1), (0, 0)))
    he, we = hpe // 2, wpe // 2
    std = xpad.reshape(B, he, 2, we, 2, C).transpose(0, 1, 3, 2, 4, 5)
    std = std.reshape(B, he, we, 4 * C)
    oh = (H + 2 - 3) // 2 + 1
    ow = (W + 2 - 3) // 2 + 1
    return std, oh, ow


def _build_patches(x_nhwc):
    """Pre-concatenate the four (dy, dx) windows -> (B, oh*ow, 16*Cin) lane-dense."""
    std, oh, ow = _space_to_depth(x_nhwc)
    wins = [std[:, dy:dy + oh, dx:dx + ow, :] for dy in (0, 1) for dx in (0, 1)]
    patches = jnp.concatenate(wins, axis=-1)            # (B, oh, ow, 4*c4)
    B = x_nhwc.shape[0]
    return patches.reshape(B, oh * ow, patches.shape[-1]), oh, ow


def _conv_offset_weights(w_hwio):
    """(3,3,Cin,64) conv weight -> (16*Cin, 64) weights matching _build_patches
    layout (window o = dy*2+dx major, then space-to-depth channel)."""
    cin = w_hwio.shape[2]
    c4 = 4 * cin
    wd = jnp.zeros((4 * c4, 64), F32)
    for dy in range(2):
        for dx in range(2):
            o = dy * 2 + dx
            for a in range(2):
                for b2 in range(2):
                    ky, kx = 2 * dy + a, 2 * dx + b2
                    if ky < 3 and kx < 3:
                        r0 = o * c4 + (a * 2 + b2) * cin
                        wd = wd.at[r0:r0 + cin, :].set(w_hwio[ky, kx])
    return wd


def early_fusion_forward(x_nchw, params, *, bt_max=128, matmul_dtype=jnp.bfloat16):
    B, Cin, H, W = x_nchw.shape
    x = jnp.transpose(x_nchw, (0, 2, 3, 1)).astype(F32)          # NHWC
    patches, oh, ow = _build_patches(x)                          # (B, s, 16*Cin)
    s = oh * ow
    k4 = patches.shape[-1]

    bt = _pick_bt(B, bt_max)
    Bp = _round_up(B, bt)
    if Bp != B:
        patches = jnp.pad(patches, ((0, Bp - B), (0, 0), (0, 0)))
    patches = patches.reshape(Bp * s, k4).astype(matmul_dtype)

    # Lane-dense classifier head: classes padded to 128, and Linear(512,64)
    # folded into it (exact in eval mode: no nonlinearity in between).
    classes = params["wo"].shape[1]
    cpad = _round_up(classes, 128)
    wo_p = jnp.zeros((64, cpad), F32).at[:, :classes].set(params["wo"])
    bo_p = jnp.zeros((1, cpad), F32).at[:, :classes].set(params["bo"])
    w_head = params["wm3"] @ wo_p                                # (512, cpad)
    b_head = params["bm3"] @ wo_p + bo_p                         # (1, cpad)

    wd = _conv_offset_weights(params["wc_hwio"])                 # (16*Cin, 64)

    mm = lambda w: w.astype(matmul_dtype)
    w_args = [mm(wd), params["bc"],
              mm(params["wl1"]), params["bl1"],
              mm(params["wl2"]), params["bl2"],
              mm(params["wm1"]), params["bm1"],
              mm(params["wm2"]), params["bm2"],
              mm(w_head), b_head]

    def full_spec(arr):
        # Constant index map => weights stay resident across grid steps.
        nd = arr.ndim
        return pl.BlockSpec(arr.shape, lambda i, _nd=nd: (0,) * _nd)

    kernel = functools.partial(_early_fusion_kernel, bt=bt, s=s,
                               mm_dtype=matmul_dtype)

    grid_spec = pltpu.PrefetchScalarGridSpec(
        num_scalar_prefetch=0,
        grid=(Bp // bt,),
        in_specs=[pl.BlockSpec((bt * s, k4), lambda i: (i, 0))]
                 + [full_spec(w) for w in w_args],
        out_specs=pl.BlockSpec((bt, cpad), lambda i: (i, 0)),
    )

    out = pl.pallas_call(
        kernel,
        grid_spec=grid_spec,
        out_shape=jax.ShapeDtypeStruct((Bp, cpad), F32),
        compiler_params=pltpu.CompilerParams(
            dimension_semantics=("parallel",),
            vmem_limit_bytes=48 * 1024 * 1024),   # comfortably under v7x's 64 MiB
    )(patches, *w_args)

    return out[:B, :classes]


def make_params(key, in_channels, classes):
    """Deterministic synthetic weights; BatchNorms folded (eval mode) into convs."""
    ks = jax.random.split(key, 20)

    def nrm(k, shape, sd):
        return (sd * jax.random.normal(k, shape)).astype(F32)

    def bn(k, c):
        k1, k2, k3, k4 = jax.random.split(k, 4)
        gamma = (1.0 + 0.1 * jax.random.normal(k1, (c,))).astype(F32)
        beta = nrm(k2, (c,), 0.05)
        mean = nrm(k3, (c,), 0.05)
        var = (0.9 + 0.2 * jax.random.uniform(k4, (c,))).astype(F32)
        return gamma, beta, mean, var

    def fold(w, b, bnp, eps=1e-5):
        gamma, beta, mean, var = bnp
        scale = gamma / jnp.sqrt(var + eps)
        return w * scale, b * scale + beta - mean * scale

    p = {}
    # conv: Conv2d(in, 64, k=3, s=2, p=1) + BN(64), weight kept HWIO (3,3,Cin,64)
    wc = nrm(ks[0], (3, 3, in_channels, 64), 0.1)
    bc = nrm(ks[1], (64,), 0.02)
    wc, bc = fold(wc, bc, bn(ks[2], 64))
    p["wc_hwio"], p["bc"] = wc, bc.reshape(1, 64)

    # local_fc: two 1x1 Conv2d(64,64) + BN(64)
    wl1, bl1 = nrm(ks[3], (64, 64), 0.1), nrm(ks[4], (64,), 0.02)
    wl1, bl1 = fold(wl1, bl1, bn(ks[5], 64))
    p["wl1"], p["bl1"] = wl1, bl1.reshape(1, 64)

    wl2, bl2 = nrm(ks[6], (64, 64), 0.1), nrm(ks[7], (64,), 0.02)
    wl2, bl2 = fold(wl2, bl2, bn(ks[8], 64))
    p["wl2"], p["bl2"] = wl2, bl2.reshape(1, 64)

    # mlp: Linear(64,512) -> Linear(512,512) -> Linear(512,64) (+ Dropout, identity)
    p["wm1"], p["bm1"] = nrm(ks[9], (64, 512), 0.08),  nrm(ks[10], (1, 512), 0.02)
    p["wm2"], p["bm2"] = nrm(ks[11], (512, 512), 0.04), nrm(ks[12], (1, 512), 0.02)
    p["wm3"], p["bm3"] = nrm(ks[13], (512, 64), 0.04),  nrm(ks[14], (1, 64), 0.02)

    # out: Linear(64, classes)
    p["wo"], p["bo"] = nrm(ks[15], (64, classes), 0.1), nrm(ks[16], (1, classes), 0.02)
    return p


def _im2col_3x3_s2(xpad, ho, wo):
    """xpad: (B, Hp, Wp, C) zero-padded by 1 -> (B, ho*wo, 9*C)."""
    B, Hp, Wp, C = xpad.shape
    cols = []
    for ky in range(3):
        for kx in range(3):
            cols.append(lax.slice(
                xpad,
                (0, ky, kx, 0),
                (B, ky + 2 * (ho - 1) + 1, kx + 2 * (wo - 1) + 1, C),
                (1, 2, 2, 1)))
    patches = jnp.stack(cols, axis=3)
    return patches.reshape(B, ho * wo, 9 * C)


def ref_forward(x_nchw, p):
    """Pure-JAX f32 reference with the PyTorch module's math."""
    B, Cin, H, W = x_nchw.shape
    x = jnp.transpose(x_nchw, (0, 2, 3, 1)).astype(F32)
    xpad = jnp.pad(x, ((0, 0), (1, 1), (1, 1), (0, 0)))
    ho = (H + 2 - 3) // 2 + 1
    wo = (W + 2 - 3) // 2 + 1
    patches = _im2col_3x3_s2(xpad, ho, wo)
    wc = p["wc_hwio"].reshape(9 * Cin, 64)
    h = jnp.maximum(patches @ wc + p["bc"], 0.0)
    h = jnp.maximum(h @ p["wl1"] + p["bl1"], 0.0)
    h = jnp.maximum(h @ p["wl2"] + p["bl2"], 0.0)
    g = h.mean(axis=1)
    z = jnp.maximum(g @ p["wm1"] + p["bm1"], 0.0)
    z = jnp.maximum(z @ p["wm2"] + p["bm2"], 0.0)
    z = z @ p["wm3"] + p["bm3"]
    return z @ p["wo"] + p["bo"]


if __name__ == "__main__":
    B, Cin, H, W, classes = 2, 4, 16, 16, 10
    key = jax.random.PRNGKey(0)
    kx, kp = jax.random.split(key)
    x = jax.random.normal(kx, (B, Cin, H, W), dtype=F32)
    params = make_params(kp, Cin, classes)

    ref = ref_forward(x, params)

    # Exactness check: f32 matmul path vs. pure-JAX reference.
    out_f32 = jax.block_until_ready(
        early_fusion_forward(x, params, matmul_dtype=jnp.float32))
    assert out_f32.shape == (B, classes), out_f32.shape
    assert jnp.allclose(out_f32, ref, atol=1e-3, rtol=1e-3), (out_f32, ref)

    # Default fast path: bf16 MXU operands, f32 accumulation (v6e/v7x native).
    out_bf16 = jax.block_until_ready(early_fusion_forward(x, params))
    assert out_bf16.shape == (B, classes), out_bf16.shape
    assert jnp.allclose(out_bf16, ref, atol=5e-2, rtol=5e-2), (out_bf16, ref)

    print("KERNEL_OK")
</pallas_src>

<mosaic_0001>
module attributes {stable_mosaic.version = 11 : i64} {
  func.func @_early_fusion_kernel(%arg0: i32, %arg1: memref<512x64xf32, #tpu.memory_space<vmem>>, %arg2: memref<64x64xf32, #tpu.memory_space<vmem>>, %arg3: memref<1x64xf32, #tpu.memory_space<vmem>>, %arg4: memref<64x64xf32, #tpu.memory_space<vmem>>, %arg5: memref<1x64xf32, #tpu.memory_space<vmem>>, %arg6: memref<64x64xf32, #tpu.memory_space<vmem>>, %arg7: memref<1x64xf32, #tpu.memory_space<vmem>>, %arg8: memref<64x512xf32, #tpu.memory_space<vmem>>, %arg9: memref<1x512xf32, #tpu.memory_space<vmem>>, %arg10: memref<512x512xf32, #tpu.memory_space<vmem>>, %arg11: memref<1x512xf32, #tpu.memory_space<vmem>>, %arg12: memref<512x128xf32, #tpu.memory_space<vmem>>, %arg13: memref<1x128xf32, #tpu.memory_space<vmem>>, %arg14: memref<8x128xf32, #tpu.memory_space<vmem>>) attributes {dimension_semantics = [#tpu.dimension_semantics<parallel>], iteration_bounds = array<i64: 1>, scalar_prefetch = 0 : i64, scratch_operands = 0 : i64, tpu.core_type = #tpu.core_type<tc>, window_params = [{transform_indices = @transform_0, window_bounds = array<i64: 512, 64>}, {pipeline_mode = #tpu.pipeline_mode<synchronous>, transform_indices = @transform_1, window_bounds = array<i64: 64, 64>}, {pipeline_mode = #tpu.pipeline_mode<synchronous>, transform_indices = @transform_2, window_bounds = array<i64: 1, 64>}, {pipeline_mode = #tpu.pipeline_mode<synchronous>, transform_indices = @transform_3, window_bounds = array<i64: 64, 64>}, {pipeline_mode = #tpu.pipeline_mode<synchronous>, transform_indices = @transform_4, window_bounds = array<i64: 1, 64>}, {pipeline_mode = #tpu.pipeline_mode<synchronous>, transform_indices = @transform_5, window_bounds = array<i64: 64, 64>}, {pipeline_mode = #tpu.pipeline_mode<synchronous>, transform_indices = @transform_6, window_bounds = array<i64: 1, 64>}, {pipeline_mode = #tpu.pipeline_mode<synchronous>, transform_indices = @transform_7, window_bounds = array<i64: 64, 512>}, {pipeline_mode = #tpu.pipeline_mode<synchronous>, transform_indices = @transform_8, window_bounds = array<i64: 1, 512>}, {pipeline_mode = #tpu.pipeline_mode<synchronous>, transform_indices = @transform_9, window_bounds = array<i64: 512, 512>}, {pipeline_mode = #tpu.pipeline_mode<synchronous>, transform_indices = @transform_10, window_bounds = array<i64: 1, 512>}, {pipeline_mode = #tpu.pipeline_mode<synchronous>, transform_indices = @transform_11, window_bounds = array<i64: 512, 128>}, {pipeline_mode = #tpu.pipeline_mode<synchronous>, transform_indices = @transform_12, window_bounds = array<i64: 1, 128>}, {transform_indices = @transform_13, window_bounds = array<i64: 8, 128>}]} {
    %c0 = arith.constant 0 : index
    %c0_0 = arith.constant 0 : index
    %0 = vector.load %arg1[%c0, %c0_0] : memref<512x64xf32, #tpu.memory_space<vmem>>, vector<512x64xf32>
    %c0_1 = arith.constant 0 : index
    %c0_2 = arith.constant 0 : index
    %1 = vector.load %arg2[%c0_1, %c0_2] : memref<64x64xf32, #tpu.memory_space<vmem>>, vector<64x64xf32>
    %cst = arith.constant dense<0.000000e+00> : vector<512x64xf32>
    %2 = tpu.matmul %0, %1, %cst {dimension_numbers = #tpu.dot_dimension_numbers<[1], [0], [0], [1], [0, 0, 1, 1], [], []>} : vector<512x64xf32>, vector<64x64xf32>, vector<512x64xf32> -> vector<512x64xf32>
    %c0_3 = arith.constant 0 : index
    %c0_4 = arith.constant 0 : index
    %3 = vector.load %arg3[%c0_3, %c0_4] : memref<1x64xf32, #tpu.memory_space<vmem>>, vector<1x64xf32>
    %4 = vector.broadcast %3 : vector<1x64xf32> to vector<512x64xf32>
    %5 = arith.addf %2, %4 : vector<512x64xf32>
    %cst_5 = arith.constant 0.000000e+00 : f32
    %6 = vector.broadcast %cst_5 : f32 to vector<512x64xf32>
    %7 = arith.maximumf %5, %6 : vector<512x64xf32>
    %c0_6 = arith.constant 0 : index
    %c0_7 = arith.constant 0 : index
    %8 = vector.load %arg4[%c0_6, %c0_7] : memref<64x64xf32, #tpu.memory_space<vmem>>, vector<64x64xf32>
    %cst_8 = arith.constant dense<0.000000e+00> : vector<512x64xf32>
    %9 = tpu.matmul %7, %8, %cst_8 {dimension_numbers = #tpu.dot_dimension_numbers<[1], [0], [0], [1], [0, 0, 1, 1], [], []>} : vector<512x64xf32>, vector<64x64xf32>, vector<512x64xf32> -> vector<512x64xf32>
    %c0_9 = arith.constant 0 : index
    %c0_10 = arith.constant 0 : index
    %10 = vector.load %arg5[%c0_9, %c0_10] : memref<1x64xf32, #tpu.memory_space<vmem>>, vector<1x64xf32>
    %11 = vector.broadcast %10 : vector<1x64xf32> to vector<512x64xf32>
    %12 = arith.addf %9, %11 : vector<512x64xf32>
    %cst_11 = arith.constant 0.000000e+00 : f32
    %13 = vector.broadcast %cst_11 : f32 to vector<512x64xf32>
    %14 = arith.maximumf %12, %13 : vector<512x64xf32>
    %c0_12 = arith.constant 0 : index
    %c0_13 = arith.constant 0 : index
    %15 = vector.load %arg6[%c0_12, %c0_13] : memref<64x64xf32, #tpu.memory_space<vmem>>, vector<64x64xf32>
    %cst_14 = arith.constant dense<0.000000e+00> : vector<512x64xf32>
    %16 = tpu.matmul %14, %15, %cst_14 {dimension_numbers = #tpu.dot_dimension_numbers<[1], [0], [0], [1], [0, 0, 1, 1], [], []>} : vector<512x64xf32>, vector<64x64xf32>, vector<512x64xf32> -> vector<512x64xf32>
    %c0_15 = arith.constant 0 : index
    %c0_16 = arith.constant 0 : index
    %17 = vector.load %arg7[%c0_15, %c0_16] : memref<1x64xf32, #tpu.memory_space<vmem>>, vector<1x64xf32>
    %18 = vector.broadcast %17 : vector<1x64xf32> to vector<512x64xf32>
    %19 = arith.addf %16, %18 : vector<512x64xf32>
    %cst_17 = arith.constant 0.000000e+00 : f32
    %20 = vector.broadcast %cst_17 : f32 to vector<512x64xf32>
    %21 = arith.maximumf %19, %20 : vector<512x64xf32>
    %22 = vector.shape_cast %21 : vector<512x64xf32> to vector<8x64x64xf32>
    %cst_18 = arith.constant dense<0.000000e+00> : vector<8x64xf32>
    %23 = vector.multi_reduction <add>, %22, %cst_18 [1] : vector<8x64x64xf32> to vector<8x64xf32>
    %cst_19 = arith.constant 6.400000e+01 : f32
    %24 = vector.broadcast %cst_19 : f32 to vector<8x64xf32>
    %25 = arith.divf %23, %24 : vector<8x64xf32>
    %c0_20 = arith.constant 0 : index
    %c0_21 = arith.constant 0 : index
    %26 = vector.load %arg8[%c0_20, %c0_21] : memref<64x512xf32, #tpu.memory_space<vmem>>, vector<64x512xf32>
    %cst_22 = arith.constant dense<0.000000e+00> : vector<8x512xf32>
    %27 = tpu.matmul %25, %26, %cst_22 {dimension_numbers = #tpu.dot_dimension_numbers<[1], [0], [0], [1], [0, 0, 1, 1], [], []>} : vector<8x64xf32>, vector<64x512xf32>, vector<8x512xf32> -> vector<8x512xf32>
    %c0_23 = arith.constant 0 : index
    %c0_24 = arith.constant 0 : index
    %28 = vector.load %arg9[%c0_23, %c0_24] : memref<1x512xf32, #tpu.memory_space<vmem>>, vector<1x512xf32>
    %29 = vector.broadcast %28 : vector<1x512xf32> to vector<8x512xf32>
    %30 = arith.addf %27, %29 : vector<8x512xf32>
    %cst_25 = arith.constant 0.000000e+00 : f32
    %31 = vector.broadcast %cst_25 : f32 to vector<8x512xf32>
    %32 = arith.maximumf %30, %31 : vector<8x512xf32>
    %c0_26 = arith.constant 0 : index
    %c0_27 = arith.constant 0 : index
    %33 = vector.load %arg10[%c0_26, %c0_27] : memref<512x512xf32, #tpu.memory_space<vmem>>, vector<512x512xf32>
    %cst_28 = arith.constant dense<0.000000e+00> : vector<8x512xf32>
    %34 = tpu.matmul %32, %33, %cst_28 {dimension_numbers = #tpu.dot_dimension_numbers<[1], [0], [0], [1], [0, 0, 1, 1], [], []>} : vector<8x512xf32>, vector<512x512xf32>, vector<8x512xf32> -> vector<8x512xf32>
    %c0_29 = arith.constant 0 : index
    %c0_30 = arith.constant 0 : index
    %35 = vector.load %arg11[%c0_29, %c0_30] : memref<1x512xf32, #tpu.memory_space<vmem>>, vector<1x512xf32>
    %36 = vector.broadcast %35 : vector<1x512xf32> to vector<8x512xf32>
    %37 = arith.addf %34, %36 : vector<8x512xf32>
    %cst_31 = arith.constant 0.000000e+00 : f32
    %38 = vector.broadcast %cst_31 : f32 to vector<8x512xf32>
    %39 = arith.maximumf %37, %38 : vector<8x512xf32>
    %c0_32 = arith.constant 0 : index
    %c0_33 = arith.constant 0 : index
    %40 = vector.load %arg12[%c0_32, %c0_33] : memref<512x128xf32, #tpu.memory_space<vmem>>, vector<512x128xf32>
    %cst_34 = arith.constant dense<0.000000e+00> : vector<8x128xf32>
    %41 = tpu.matmul %39, %40, %cst_34 {dimension_numbers = #tpu.dot_dimension_numbers<[1], [0], [0], [1], [0, 0, 1, 1], [], []>} : vector<8x512xf32>, vector<512x128xf32>, vector<8x128xf32> -> vector<8x128xf32>
    %c0_35 = arith.constant 0 : index
    %c0_36 = arith.constant 0 : index
    %42 = vector.load %arg13[%c0_35, %c0_36] : memref<1x128xf32, #tpu.memory_space<vmem>>, vector<1x128xf32>
    %43 = vector.broadcast %42 : vector<1x128xf32> to vector<8x128xf32>
    %44 = arith.addf %41, %43 : vector<8x128xf32>
    %c0_37 = arith.constant 0 : index
    %c0_38 = arith.constant 0 : index
    %45 = vector.load %arg14[%c0_37, %c0_38] : memref<8x128xf32, #tpu.memory_space<vmem>>, vector<8x128xf32>
    tpu.vector_store %arg14[%c0_37, %c0_38], %44 {strides = array<i32>} : memref<8x128xf32, #tpu.memory_space<vmem>>, vector<8x128xf32>,
    return
  }
  func.func @transform_0(%arg0: i32) -> (i32, i32) {
    %c0_i32 = arith.constant 0 : i32
    %c0_i32_0 = arith.constant 0 : i32
    return %arg0, %c0_i32 : i32, i32
  }
  func.func @transform_1(%arg0: i32) -> (i32, i32) {
    %c0_i32 = arith.constant 0 : i32
    %c0_i32_0 = arith.constant 0 : i32
    %c0_i32_1 = arith.constant 0 : i32
    return %c0_i32, %c0_i32_0 : i32, i32
  }
  func.func @transform_2(%arg0: i32) -> (i32, i32) {
    %c0_i32 = arith.constant 0 : i32
    %c0_i32_0 = arith.constant 0 : i32
    %c0_i32_1 = arith.constant 0 : i32
    return %c0_i32, %c0_i32_0 : i32, i32
  }
  func.func @transform_3(%arg0: i32) -> (i32, i32) {
    %c0_i32 = arith.constant 0 : i32
    %c0_i32_0 = arith.constant 0 : i32
    %c0_i32_1 = arith.constant 0 : i32
    return %c0_i32, %c0_i32_0 : i32, i32
  }
  func.func @transform_4(%arg0: i32) -> (i32, i32) {
    %c0_i32 = arith.constant 0 : i32
    %c0_i32_0 = arith.constant 0 : i32
    %c0_i32_1 = arith.constant 0 : i32
    return %c0_i32, %c0_i32_0 : i32, i32
  }
  func.func @transform_5(%arg0: i32) -> (i32, i32) {
    %c0_i32 = arith.constant 0 : i32
    %c0_i32_0 = arith.constant 0 : i32
    %c0_i32_1 = arith.constant 0 : i32
    return %c0_i32, %c0_i32_0 : i32, i32
  }
  func.func @transform_6(%arg0: i32) -> (i32, i32) {
    %c0_i32 = arith.constant 0 : i32
    %c0_i32_0 = arith.constant 0 : i32
    %c0_i32_1 = arith.constant 0 : i32
    return %c0_i32, %c0_i32_0 : i32, i32
  }
  func.func @transform_7(%arg0: i32) -> (i32, i32) {
    %c0_i32 = arith.constant 0 : i32
    %c0_i32_0 = arith.constant 0 : i32
    %c0_i32_1 = arith.constant 0 : i32
    return %c0_i32, %c0_i32_0 : i32, i32
  }
  func.func @transform_8(%arg0: i32) -> (i32, i32) {
    %c0_i32 = arith.constant 0 : i32
    %c0_i32_0 = arith.constant 0 : i32
    %c0_i32_1 = arith.constant 0 : i32
    return %c0_i32, %c0_i32_0 : i32, i32
  }
  func.func @transform_9(%arg0: i32) -> (i32, i32) {
    %c0_i32 = arith.constant 0 : i32
    %c0_i32_0 = arith.constant 0 : i32
    %c0_i32_1 = arith.constant 0 : i32
    return %c0_i32, %c0_i32_0 : i32, i32
  }
  func.func @transform_10(%arg0: i32) -> (i32, i32) {
    %c0_i32 = arith.constant 0 : i32
    %c0_i32_0 = arith.constant 0 : i32
    %c0_i32_1 = arith.constant 0 : i32
    return %c0_i32, %c0_i32_0 : i32, i32
  }
  func.func @transform_11(%arg0: i32) -> (i32, i32) {
    %c0_i32 = arith.constant 0 : i32
    %c0_i32_0 = arith.constant 0 : i32
    %c0_i32_1 = arith.constant 0 : i32
    return %c0_i32, %c0_i32_0 : i32, i32
  }
  func.func @transform_12(%arg0: i32) -> (i32, i32) {
    %c0_i32 = arith.constant 0 : i32
    %c0_i32_0 = arith.constant 0 : i32
    %c0_i32_1 = arith.constant 0 : i32
    return %c0_i32, %c0_i32_0 : i32, i32
  }
  func.func @transform_13(%arg0: i32) -> (i32, i32) {
    %c0_i32 = arith.constant 0 : i32
    %c0_i32_0 = arith.constant 0 : i32
    return %arg0, %c0_i32 : i32, i32
  }
}

</mosaic_0001>

<llo_original>
// kernel: tpu_custom_call.1
$region0: #{tpu_custom_call.1}
  #allocation0 [shape = 'u32[]', space=smem, size = 0x4, offset = 0x4, fixed_abs, tag = 'smem constant byte address 0x4 - core index']
  #allocation1 [shape = 'u32[72,128]{1,0:T(1,128)}', space=vmem, size = 0x9000, scoped, tag = 'internal scratch']
  %s0 = inlined_call_operand.vmem [shape: f32[512,64], index: 0, kind: input, shape index: {}]
  %s1 = inlined_call_operand.hbm [shape: f32[64,64], index: 1, kind: input, shape index: {}]
  %s2 = inlined_call_operand.vmem [shape: f32[1,64], index: 2, kind: input, shape index: {}]
  %s3 = inlined_call_operand.hbm [shape: f32[64,64], index: 3, kind: input, shape index: {}]
  %s4 = inlined_call_operand.vmem [shape: f32[1,64], index: 4, kind: input, shape index: {}]
  %s5 = inlined_call_operand.hbm [shape: f32[64,64], index: 5, kind: input, shape index: {}]
  %s6 = inlined_call_operand.hbm [shape: f32[1,64], index: 6, kind: input, shape index: {}]
  %s7 = inlined_call_operand.vmem [shape: f32[64,512], index: 7, kind: input, shape index: {}]
  %s8 = inlined_call_operand.vmem [shape: f32[1,512], index: 8, kind: input, shape index: {}]
  %s9 = inlined_call_operand.hbm [shape: f32[512,512], index: 9, kind: input, shape index: {}]
  %s10 = inlined_call_operand.vmem [shape: f32[1,512], index: 10, kind: input, shape index: {}]
  %s11 = inlined_call_operand.vmem [shape: f32[512,128], index: 11, kind: input, shape index: {}]
  %s12 = inlined_call_operand.hbm [shape: f32[1,128], index: 12, kind: input, shape index: {}]
  %s13 = inlined_call_operand.hbm [shape: f32[8,128], index: 13, kind: output, shape index: {}]
  %s14 = sld [smem:[#allocation0]]
  $region86: #{tpu_custom_call.1} parent=0
    _
  %s16 = ssub.s32 1, %s14
  %s17 = scalar_select 0, %s16, %s14
  $region1: #{tpu_custom_call.1} parent=0
    #allocation2 [shape = 'u8[32768]{0}', space=vmem, size = 0x8000, scoped, tag = 'input window, operand 1, single buffered']
    #allocation3 [shape = 's32[1]{0}', space=sflag, size = 0x4, scoped, tag = 'scoped memory for tpu_custom_call.1']
    #allocation4 [shape = 's32[1]{0}', space=sflag, size = 0x4, scoped, tag = 'scoped memory for tpu_custom_call.1']
    #allocation5 [shape = 'u8[32768]{0}', space=vmem, size = 0x8000, scoped, tag = 'input window, operand 3, single buffered']
    #allocation6 [shape = 's32[1]{0}', space=sflag, size = 0x4, scoped, tag = 'scoped memory for tpu_custom_call.1']
    #allocation7 [shape = 'u8[32768]{0}', space=vmem, size = 0x8000, scoped, tag = 'input window, operand 5, single buffered']
    #allocation8 [shape = 'u8[512]{0}', space=vmem, size = 0x400, scoped, tag = 'input window, operand 6, single buffered']
    #allocation9 [shape = 's32[1]{0}', space=sflag, size = 0x4, scoped, tag = 'scoped memory for tpu_custom_call.1']
    #allocation10 [shape = 'u8[1048576]{0}', space=vmem, size = 0x100000, scoped, tag = 'input window, operand 9, single buffered']
    #allocation11 [shape = 'u8[512]{0}', space=vmem, size = 0x400, scoped, tag = 'input window, operand 12, single buffered']
    #allocation12 [shape = 's32[1]{0}', space=sflag, size = 0x4, scoped, tag = 'scoped memory for tpu_custom_call.1']
    #allocation13 [shape = 'u8[4096]{0}', space=vmem, size = 0x1000, scoped, tag = 'output window, operand 0, single buffered']
    %18 = vsyncpa [#allocation3], 0
    %19 = vsyncpa [#allocation6], 0
    %20 = vsyncpa [#allocation9], 0
    %21 = vsyncpa [#allocation12], 0
    %22 = vsyncpa [#allocation4], 0
    // Predicated region
    $region2: #{tpu_custom_call.1} parent=1 // pred_check
      _
    $region3: #{tpu_custom_call.1} parent=1 // pred_check_branch
      %24 = sbr.rel (0) target = $region5
    $region4: #{tpu_custom_call.1} parent=1 // pred_region
      _
    $region5: #{tpu_custom_call.1} parent=1 // pred_fallthru
      _
    // Predicated region
    $region6: #{tpu_custom_call.1} parent=1 // pred_check
      _
    $region7: #{tpu_custom_call.1} parent=1 // pred_check_branch
      %26 = sbr.rel (0) target = $region9
    $region8: #{tpu_custom_call.1} parent=1 // pred_region
      %28 = vsyncadd [#allocation3], 0
      %s29 = sshll.u32 %s1, 4
      %s30 = int_to_ptr.hbm [resolvable:$true] %s29
      %s31 = sshll.u32 [#allocation2], 4
      %s32 = int_to_ptr.vmem [resolvable:$true] %s31
      %37 = dma.hbm_to_vmem [thread:$0]  %s30, 1024, %s32, [#allocation3], 128, 128, 8
    $region9: #{tpu_custom_call.1} parent=1 // pred_fallthru
      _
    // Predicated region
    $region10: #{tpu_custom_call.1} parent=1 // pred_check
      _
    $region11: #{tpu_custom_call.1} parent=1 // pred_check_branch
      %39 = sbr.rel (0) target = $region13
    $region12: #{tpu_custom_call.1} parent=1 // pred_region
      _
    $region13: #{tpu_custom_call.1} parent=1 // pred_fallthru
      _
    // Predicated region
    $region14: #{tpu_custom_call.1} parent=1 // pred_check
      _
    $region15: #{tpu_custom_call.1} parent=1 // pred_check_branch
      %41 = sbr.rel (0) target = $region17
    $region16: #{tpu_custom_call.1} parent=1 // pred_region
      %43 = vsyncadd [#allocation6], 0
      %s44 = sshll.u32 %s3, 4
      %s45 = int_to_ptr.hbm [resolvable:$true] %s44
      %s46 = sshll.u32 [#allocation5], 4
      %s47 = int_to_ptr.vmem [resolvable:$true] %s46
      %52 = dma.hbm_to_vmem [thread:$0]  %s45, 1024, %s47, [#allocation6], 128, 128, 8
    $region17: #{tpu_custom_call.1} parent=1 // pred_fallthru
      _
    // Predicated region
    $region18: #{tpu_custom_call.1} parent=1 // pred_check
      _
    $region19: #{tpu_custom_call.1} parent=1 // pred_check_branch
      %54 = sbr.rel (0) target = $region21
    $region20: #{tpu_custom_call.1} parent=1 // pred_region
      _
    $region21: #{tpu_custom_call.1} parent=1 // pred_fallthru
      _
    // Predicated region
    $region22: #{tpu_custom_call.1} parent=1 // pred_check
      _
    $region23: #{tpu_custom_call.1} parent=1 // pred_check_branch
      %56 = sbr.rel (0) target = $region25
    $region24: #{tpu_custom_call.1} parent=1 // pred_region
      %58 = vsyncadd [#allocation6], 0
      %s59 = sshll.u32 %s5, 4
      %s60 = int_to_ptr.hbm [resolvable:$true] %s59
      %s61 = sshll.u32 [#allocation7], 4
      %s62 = int_to_ptr.vmem [resolvable:$true] %s61
      %67 = dma.hbm_to_vmem [thread:$0]  %s60, 1024, %s62, [#allocation6], 128, 128, 8
    $region25: #{tpu_custom_call.1} parent=1 // pred_fallthru
      _
    // Predicated region
    $region26: #{tpu_custom_call.1} parent=1 // pred_check
      _
    $region27: #{tpu_custom_call.1} parent=1 // pred_check_branch
      %69 = sbr.rel (0) target = $region29
    $region28: #{tpu_custom_call.1} parent=1 // pred_region
      %71 = vsyncadd [#allocation9], 0
      %s73 = sshll.u32 %s6, 4
      %s74 = int_to_ptr.hbm [resolvable:$true] %s73
      %s75 = sshll.u32 [#allocation8], 4
      %s76 = int_to_ptr.vmem [resolvable:$true] %s75
      %78 = dma.hbm_to_vmem [thread:$0]  %s74, 16, %s76, [#allocation9]
    $region29: #{tpu_custom_call.1} parent=1 // pred_fallthru
      _
    // Predicated region
    $region30: #{tpu_custom_call.1} parent=1 // pred_check
      _
    $region31: #{tpu_custom_call.1} parent=1 // pred_check_branch
      %80 = sbr.rel (0) target = $region33
    $region32: #{tpu_custom_call.1} parent=1 // pred_region
      _
    $region33: #{tpu_custom_call.1} parent=1 // pred_fallthru
      _
    // Predicated region
    $region34: #{tpu_custom_call.1} parent=1 // pred_check
      _
    $region35: #{tpu_custom_call.1} parent=1 // pred_check_branch
      %82 = sbr.rel (0) target = $region37
    $region36: #{tpu_custom_call.1} parent=1 // pred_region
      _
    $region37: #{tpu_custom_call.1} parent=1 // pred_fallthru
      _
    // Predicated region
    $region38: #{tpu_custom_call.1} parent=1 // pred_check
      _
    $region39: #{tpu_custom_call.1} parent=1 // pred_check_branch
      %84 = sbr.rel (0) target = $region41
    $region40: #{tpu_custom_call.1} parent=1 // pred_region
      %86 = vsyncadd [#allocation9], 0
      %s87 = sshll.u32 %s9, 4
      %s88 = int_to_ptr.hbm [resolvable:$true] %s87
      %s89 = sshll.u32 [#allocation10], 4
      %s90 = int_to_ptr.vmem [resolvable:$true] %s89
      %95 = dma.hbm_to_vmem [thread:$0]  %s88, 32768, %s90, [#allocation9], 512, 512, 32
    $region41: #{tpu_custom_call.1} parent=1 // pred_fallthru
      _
    // Predicated region
    $region42: #{tpu_custom_call.1} parent=1 // pred_check
      _
    $region43: #{tpu_custom_call.1} parent=1 // pred_check_branch
      %97 = sbr.rel (0) target = $region45
    $region44: #{tpu_custom_call.1} parent=1 // pred_region
      _
    $region45: #{tpu_custom_call.1} parent=1 // pred_fallthru
      _
    // Predicated region
    $region46: #{tpu_custom_call.1} parent=1 // pred_check
      _
    $region47: #{tpu_custom_call.1} parent=1 // pred_check_branch
      %99 = sbr.rel (0) target = $region49
    $region48: #{tpu_custom_call.1} parent=1 // pred_region
      _
    $region49: #{tpu_custom_call.1} parent=1 // pred_fallthru
      _
    // Predicated region
    $region50: #{tpu_custom_call.1} parent=1 // pred_check
      _
    $region51: #{tpu_custom_call.1} parent=1 // pred_check_branch
      %101 = sbr.rel (0) target = $region53
    $region52: #{tpu_custom_call.1} parent=1 // pred_region
      %103 = vsyncadd [#allocation12], 0
      %s105 = sshll.u32 %s12, 4
      %s106 = int_to_ptr.hbm [resolvable:$true] %s105
      %s107 = sshll.u32 [#allocation11], 4
      %s108 = int_to_ptr.vmem [resolvable:$true] %s107
      %110 = dma.hbm_to_vmem [thread:$0]  %s106, 16, %s108, [#allocation12]
    $region53: #{tpu_custom_call.1} parent=1 // pred_fallthru
      _
    // Predicated region
    $region54: #{tpu_custom_call.1} parent=1 // pred_check
      _
    $region55: #{tpu_custom_call.1} parent=1 // pred_check_branch
      %112 = sbr.rel (0) target = $region57
    $region56: #{tpu_custom_call.1} parent=1 // pred_region
      %114 = dma.done [#allocation3], 1024
    $region57: #{tpu_custom_call.1} parent=1 // pred_fallthru
      _
    // Predicated region
    $region58: #{tpu_custom_call.1} parent=1 // pred_check
      _
    $region59: #{tpu_custom_call.1} parent=1 // pred_check_branch
      %116 = sbr.rel (0) target = $region61
    $region60: #{tpu_custom_call.1} parent=1 // pred_region
      %118 = dma.done [#allocation6], 1024
    $region61: #{tpu_custom_call.1} parent=1 // pred_fallthru
      _
    // Predicated region
    $region62: #{tpu_custom_call.1} parent=1 // pred_check
      _
    $region63: #{tpu_custom_call.1} parent=1 // pred_check_branch
      %120 = sbr.rel (0) target = $region65
    $region64: #{tpu_custom_call.1} parent=1 // pred_region
      %122 = dma.done [#allocation6], 1024
    $region65: #{tpu_custom_call.1} parent=1 // pred_fallthru
      _
    // Predicated region
    $region66: #{tpu_custom_call.1} parent=1 // pred_check
      _
    $region67: #{tpu_custom_call.1} parent=1 // pred_check_branch
      %124 = sbr.rel (0) target = $region69
    $region68: #{tpu_custom_call.1} parent=1 // pred_region
      %126 = dma.done [#allocation9], 16
    $region69: #{tpu_custom_call.1} parent=1 // pred_fallthru
      _
    // Predicated region
    $region70: #{tpu_custom_call.1} parent=1 // pred_check
      _
    $region71: #{tpu_custom_call.1} parent=1 // pred_check_branch
      %128 = sbr.rel (0) target = $region73
    $region72: #{tpu_custom_call.1} parent=1 // pred_region
      %130 = dma.done [#allocation9], 32768
    $region73: #{tpu_custom_call.1} parent=1 // pred_fallthru
      _
    // Predicated region
    $region74: #{tpu_custom_call.1} parent=1 // pred_check
      _
    $region75: #{tpu_custom_call.1} parent=1 // pred_check_branch
      %132 = sbr.rel (0) target = $region77
    $region76: #{tpu_custom_call.1} parent=1 // pred_region
      %134 = dma.done [#allocation12], 16
    $region77: #{tpu_custom_call.1} parent=1 // pred_fallthru
      _
    %v135 = vld [vmem:[%s0] sm:$0xff]
    %v136 = vld [vmem:[%s0 + $0x8] sm:$0xff]
    %v137 = vld [vmem:[%s0 + $0x10] sm:$0xff]
    %v138 = vld [vmem:[%s0 + $0x18] sm:$0xff]
    %v139 = vld [vmem:[%s0 + $0x20] sm:$0xff]
    %v140 = vld [vmem:[%s0 + $0x28] sm:$0xff]
    %v141 = vld [vmem:[%s0 + $0x30] sm:$0xff]
    %v142 = vld [vmem:[%s0 + $0x38] sm:$0xff]
    %v143 = vld [vmem:[%s0 + $0x40] sm:$0xff]
    %v144 = vld [vmem:[%s0 + $0x48] sm:$0xff]
    %v145 = vld [vmem:[%s0 + $0x50] sm:$0xff]
    %v146 = vld [vmem:[%s0 + $0x58] sm:$0xff]
    %v147 = vld [vmem:[%s0 + $0x60] sm:$0xff]
    %v148 = vld [vmem:[%s0 + $0x68] sm:$0xff]
    %v149 = vld [vmem:[%s0 + $0x70] sm:$0xff]
    %v150 = vld [vmem:[%s0 + $0x78] sm:$0xff]
    %v151 = vld [vmem:[%s0 + $0x80] sm:$0xff]
    %v152 = vld [vmem:[%s0 + $0x88] sm:$0xff]
    %v153 = vld [vmem:[%s0 + $0x90] sm:$0xff]
    %v154 = vld [vmem:[%s0 + $0x98] sm:$0xff]
    %v155 = vld [vmem:[%s0 + $0xa0] sm:$0xff]
    %v156 = vld [vmem:[%s0 + $0xa8] sm:$0xff]
    %v157 = vld [vmem:[%s0 + $0xb0] sm:$0xff]
    %v158 = vld [vmem:[%s0 + $0xb8] sm:$0xff]
    %v159 = vld [vmem:[%s0 + $0xc0] sm:$0xff]
    %v160 = vld [vmem:[%s0 + $0xc8] sm:$0xff]
    %v161 = vld [vmem:[%s0 + $0xd0] sm:$0xff]
    %v162 = vld [vmem:[%s0 + $0xd8] sm:$0xff]
    %v163 = vld [vmem:[%s0 + $0xe0] sm:$0xff]
    %v164 = vld [vmem:[%s0 + $0xe8] sm:$0xff]
    %v165 = vld [vmem:[%s0 + $0xf0] sm:$0xff]
    %v166 = vld [vmem:[%s0 + $0xf8] sm:$0xff]
    %v167 = vld [vmem:[%s0 + $0x100] sm:$0xff]
    %v168 = vld [vmem:[%s0 + $0x108] sm:$0xff]
    %v169 = vld [vmem:[%s0 + $0x110] sm:$0xff]
    %v170 = vld [vmem:[%s0 + $0x118] sm:$0xff]
    %v171 = vld [vmem:[%s0 + $0x120] sm:$0xff]
    %v172 = vld [vmem:[%s0 + $0x128] sm:$0xff]
    %v173 = vld [vmem:[%s0 + $0x130] sm:$0xff]
    %v174 = vld [vmem:[%s0 + $0x138] sm:$0xff]
    %v175 = vld [vmem:[%s0 + $0x140] sm:$0xff]
    %v176 = vld [vmem:[%s0 + $0x148] sm:$0xff]
    %v177 = vld [vmem:[%s0 + $0x150] sm:$0xff]
    %v178 = vld [vmem:[%s0 + $0x158] sm:$0xff]
    %v179 = vld [vmem:[%s0 + $0x160] sm:$0xff]
    %v180 = vld [vmem:[%s0 + $0x168] sm:$0xff]
    %v181 = vld [vmem:[%s0 + $0x170] sm:$0xff]
    %v182 = vld [vmem:[%s0 + $0x178] sm:$0xff]
    %v183 = vld [vmem:[%s0 + $0x180] sm:$0xff]
    %v184 = vld [vmem:[%s0 + $0x188] sm:$0xff]
    %v185 = vld [vmem:[%s0 + $0x190] sm:$0xff]
    %v186 = vld [vmem:[%s0 + $0x198] sm:$0xff]
    %v187 = vld [vmem:[%s0 + $0x1a0] sm:$0xff]
    %v188 = vld [vmem:[%s0 + $0x1a8] sm:$0xff]
    %v189 = vld [vmem:[%s0 + $0x1b0] sm:$0xff]
    %v190 = vld [vmem:[%s0 + $0x1b8] sm:$0xff]
    %v191 = vld [vmem:[%s0 + $0x1c0] sm:$0xff]
    %v192 = vld [vmem:[%s0 + $0x1c8] sm:$0xff]
    %v193 = vld [vmem:[%s0 + $0x1d0] sm:$0xff]
    %v194 = vld [vmem:[%s0 + $0x1d8] sm:$0xff]
    %v195 = vld [vmem:[%s0 + $0x1e0] sm:$0xff]
    %v196 = vld [vmem:[%s0 + $0x1e8] sm:$0xff]
    %v197 = vld [vmem:[%s0 + $0x1f0] sm:$0xff]
    %v198 = vld [vmem:[%s0 + $0x1f8] sm:$0xff]
    %v199 = vld [vmem:[#allocation2] sm:$0xff]
    %v200 = vld [vmem:[#allocation2 + $0x8] sm:$0xff]
    %v201 = vld [vmem:[#allocation2 + $0x10] sm:$0xff]
    %v202 = vld [vmem:[#allocation2 + $0x18] sm:$0xff]
    %v203 = vld [vmem:[#allocation2 + $0x20] sm:$0xff]
    %v204 = vld [vmem:[#allocation2 + $0x28] sm:$0xff]
    %v205 = vld [vmem:[#allocation2 + $0x30] sm:$0xff]
    %v206 = vld [vmem:[#allocation2 + $0x38] sm:$0xff]
    %v207 = vld [vmem:[%s2] sm:$0x1]
    %v209 = vperm.slane %v207, 0
    %vm211 = vcmask 523264
    %v213 = vsel %vm211, %v135, 0
    %v216 = vsel %vm211, %v136, 0
    %v219 = vsel %vm211, %v137, 0
    %v222 = vsel %vm211, %v138, 0
    %v225 = vsel %vm211, %v139, 0
    %v228 = vsel %vm211, %v140, 0
    %v231 = vsel %vm211, %v141, 0
    %v234 = vsel %vm211, %v142, 0
    %v237 = vsel %vm211, %v143, 0
    %v240 = vsel %vm211, %v144, 0
    %v243 = vsel %vm211, %v145, 0
    %v246 = vsel %vm211, %v146, 0
    %v249 = vsel %vm211, %v147, 0
    %v252 = vsel %vm211, %v148, 0
    %v255 = vsel %vm211, %v149, 0
    %v258 = vsel %vm211, %v150, 0
    %v261 = vsel %vm211, %v151, 0
    %v264 = vsel %vm211, %v152, 0
    %v267 = vsel %vm211, %v153, 0
    %v270 = vsel %vm211, %v154, 0
    %v273 = vsel %vm211, %v155, 0
    %v276 = vsel %vm211, %v156, 0
    %v279 = vsel %vm211, %v157, 0
    %v282 = vsel %vm211, %v158, 0
    %v285 = vsel %vm211, %v159, 0
    %v288 = vsel %vm211, %v160, 0
    %v291 = vsel %vm211, %v161, 0
    %v294 = vsel %vm211, %v162, 0
    %v297 = vsel %vm211, %v163, 0
    %v300 = vsel %vm211, %v164, 0
    %v303 = vsel %vm211, %v165, 0
    %v306 = vsel %vm211, %v166, 0
    %v309 = vsel %vm211, %v167, 0
    %v312 = vsel %vm211, %v168, 0
    %v315 = vsel %vm211, %v169, 0
    %v318 = vsel %vm211, %v170, 0
    %v321 = vsel %vm211, %v171, 0
    %v324 = vsel %vm211, %v172, 0
    %v327 = vsel %vm211, %v173, 0
    %v330 = vsel %vm211, %v174, 0
    %v333 = vsel %vm211, %v175, 0
    %v336 = vsel %vm211, %v176, 0
    %v339 = vsel %vm211, %v177, 0
    %v342 = vsel %vm211, %v178, 0
    %v345 = vsel %vm211, %v179, 0
    %v348 = vsel %vm211, %v180, 0
    %v351 = vsel %vm211, %v181, 0
    %v354 = vsel %vm211, %v182, 0
    %v357 = vsel %vm211, %v183, 0
    %v360 = vsel %vm211, %v184, 0
    %v363 = vsel %vm211, %v185, 0
    %v366 = vsel %vm211, %v186, 0
    %v369 = vsel %vm211, %v187, 0
    %v372 = vsel %vm211, %v188, 0
    %v375 = vsel %vm211, %v189, 0
    %v378 = vsel %vm211, %v190, 0
    %v381 = vsel %vm211, %v191, 0
    %v384 = vsel %vm211, %v192, 0
    %v387 = vsel %vm211, %v193, 0
    %v390 = vsel %vm211, %v194, 0
    %v393 = vsel %vm211, %v195, 0
    %v396 = vsel %vm211, %v196, 0
    %v399 = vsel %vm211, %v197, 0
    %v402 = vsel %vm211, %v198, 0
    %404 = vmatpush.msra.mxu0 0.0
    %405 = vmatpush.msra.mxu0 0.0
    %406 = vmatpush.msra.mxu0 0.0
    %407 = vmatpush.msra.mxu0 0.0
    %408 = vmatpush.msra.mxu0 0.0
    %409 = vmatpush.msra.mxu0 0.0
    %410 = vmatpush.msra.mxu0 0.0
    %411 = vmatpush.msra.mxu0 0.0
    %412 = vmatpush.msra.mxu0 %v206
    %413 = vmatpush.msra.mxu0 %v205
    %414 = vmatpush.msra.mxu0 %v204
    %415 = vmatpush.msra.mxu0 %v203
    %416 = vmatpush.msra.mxu0 %v202
    %417 = vmatpush.msra.mxu0 %v201
    %418 = vmatpush.msra.mxu0 %v200
    %419 = vmatpush.msra.mxu0 %v199
    %420 = vmatmul.f32.gmra.mxu0 %v213
    %v421 = vpop.f32.mrf.mxu0
    %v422 = vadd.f32 %v209, %v421
    %423 = vmatmul.f32.gmra.mxu0 %v216
    %v424 = vpop.f32.mrf.mxu0
    %v425 = vadd.f32 %v209, %v424
    %426 = vmatmul.f32.gmra.mxu0 %v219
    %v427 = vpop.f32.mrf.mxu0
    %v428 = vadd.f32 %v209, %v427
    %429 = vmatmul.f32.gmra.mxu0 %v222
    %v430 = vpop.f32.mrf.mxu0
    %v431 = vadd.f32 %v209, %v430
    %432 = vmatmul.f32.gmra.mxu0 %v225
    %v433 = vpop.f32.mrf.mxu0
    %v434 = vadd.f32 %v209, %v433
    %435 = vmatmul.f32.gmra.mxu0 %v228
    %v436 = vpop.f32.mrf.mxu0
    %v437 = vadd.f32 %v209, %v436
    %438 = vmatmul.f32.gmra.mxu0 %v231
    %v439 = vpop.f32.mrf.mxu0
    %v440 = vadd.f32 %v209, %v439
    %441 = vmatmul.f32.gmra.mxu0 %v234
    %v442 = vpop.f32.mrf.mxu0
    %v443 = vadd.f32 %v209, %v442
    %444 = vmatmul.f32.gmra.mxu0 %v237
    %v445 = vpop.f32.mrf.mxu0
    %v446 = vadd.f32 %v209, %v445
    %447 = vmatmul.f32.gmra.mxu0 %v240
    %v448 = vpop.f32.mrf.mxu0
    %v449 = vadd.f32 %v209, %v448
    %450 = vmatmul.f32.gmra.mxu0 %v243
    %v451 = vpop.f32.mrf.mxu0
    %v452 = vadd.f32 %v209, %v451
    %453 = vmatmul.f32.gmra.mxu0 %v246
    %v454 = vpop.f32.mrf.mxu0
    %v455 = vadd.f32 %v209, %v454
    %456 = vmatmul.f32.gmra.mxu0 %v249
    %v457 = vpop.f32.mrf.mxu0
    %v458 = vadd.f32 %v209, %v457
    %459 = vmatmul.f32.gmra.mxu0 %v252
    %v460 = vpop.f32.mrf.mxu0
    %v461 = vadd.f32 %v209, %v460
    %462 = vmatmul.f32.gmra.mxu0 %v255
    %v463 = vpop.f32.mrf.mxu0
    %v464 = vadd.f32 %v209, %v463
    %465 = vmatmul.f32.gmra.mxu0 %v258
    %v466 = vpop.f32.mrf.mxu0
    %v467 = vadd.f32 %v209, %v466
    %468 = vmatmul.f32.gmra.mxu0 %v261
    %v469 = vpop.f32.mrf.mxu0
    %v470 = vadd.f32 %v209, %v469
    %471 = vmatmul.f32.gmra.mxu0 %v264
    %v472 = vpop.f32.mrf.mxu0
    %v473 = vadd.f32 %v209, %v472
    %474 = vmatmul.f32.gmra.mxu0 %v267
    %v475 = vpop.f32.mrf.mxu0
    %v476 = vadd.f32 %v209, %v475
    %477 = vmatmul.f32.gmra.mxu0 %v270
    %v478 = vpop.f32.mrf.mxu0
    %v479 = vadd.f32 %v209, %v478
    %480 = vmatmul.f32.gmra.mxu0 %v273
    %v481 = vpop.f32.mrf.mxu0
    %v482 = vadd.f32 %v209, %v481
    %483 = vmatmul.f32.gmra.mxu0 %v276
    %v484 = vpop.f32.mrf.mxu0
    %v485 = vadd.f32 %v209, %v484
    %486 = vmatmul.f32.gmra.mxu0 %v279
    %v487 = vpop.f32.mrf.mxu0
    %v488 = vadd.f32 %v209, %v487
    %489 = vmatmul.f32.gmra.mxu0 %v282
    %v490 = vpop.f32.mrf.mxu0
    %v491 = vadd.f32 %v209, %v490
    %492 = vmatmul.f32.gmra.mxu0 %v285
    %v493 = vpop.f32.mrf.mxu0
    %v494 = vadd.f32 %v209, %v493
    %495 = vmatmul.f32.gmra.mxu0 %v288
    %v496 = vpop.f32.mrf.mxu0
    %v497 = vadd.f32 %v209, %v496
    %498 = vmatmul.f32.gmra.mxu0 %v291
    %v499 = vpop.f32.mrf.mxu0
    %v500 = vadd.f32 %v209, %v499
    %501 = vmatmul.f32.gmra.mxu0 %v294
    %v502 = vpop.f32.mrf.mxu0
    %v503 = vadd.f32 %v209, %v502
    %504 = vmatmul.f32.gmra.mxu0 %v297
    %v505 = vpop.f32.mrf.mxu0
    %v506 = vadd.f32 %v209, %v505
    %507 = vmatmul.f32.gmra.mxu0 %v300
    %v508 = vpop.f32.mrf.mxu0
    %v509 = vadd.f32 %v209, %v508
    %510 = vmatmul.f32.gmra.mxu0 %v303
    %v511 = vpop.f32.mrf.mxu0
    %v512 = vadd.f32 %v209, %v511
    %513 = vmatmul.f32.gmra.mxu0 %v306
    %v514 = vpop.f32.mrf.mxu0
    %v515 = vadd.f32 %v209, %v514
    %516 = vmatmul.f32.gmra.mxu0 %v309
    %v517 = vpop.f32.mrf.mxu0
    %v518 = vadd.f32 %v209, %v517
    %519 = vmatmul.f32.gmra.mxu0 %v312
    %v520 = vpop.f32.mrf.mxu0
    %v521 = vadd.f32 %v209, %v520
    %522 = vmatmul.f32.gmra.mxu0 %v315
    %v523 = vpop.f32.mrf.mxu0
    %v524 = vadd.f32 %v209, %v523
    %525 = vmatmul.f32.gmra.mxu0 %v318
    %v526 = vpop.f32.mrf.mxu0
    %v527 = vadd.f32 %v209, %v526
    %528 = vmatmul.f32.gmra.mxu0 %v321
    %v529 = vpop.f32.mrf.mxu0
    %v530 = vadd.f32 %v209, %v529
    %531 = vmatmul.f32.gmra.mxu0 %v324
    %v532 = vpop.f32.mrf.mxu0
    %v533 = vadd.f32 %v209, %v532
    %534 = vmatmul.f32.gmra.mxu0 %v327
    %v535 = vpop.f32.mrf.mxu0
    %v536 = vadd.f32 %v209, %v535
    %537 = vmatmul.f32.gmra.mxu0 %v330
    %v538 = vpop.f32.mrf.mxu0
    %v539 = vadd.f32 %v209, %v538
    %540 = vmatmul.f32.gmra.mxu0 %v333
    %v541 = vpop.f32.mrf.mxu0
    %v542 = vadd.f32 %v209, %v541
    %543 = vmatmul.f32.gmra.mxu0 %v336
    %v544 = vpop.f32.mrf.mxu0
    %v545 = vadd.f32 %v209, %v544
    %546 = vmatmul.f32.gmra.mxu0 %v339
    %v547 = vpop.f32.mrf.mxu0
    %v548 = vadd.f32 %v209, %v547
    %549 = vmatmul.f32.gmra.mxu0 %v342
    %v550 = vpop.f32.mrf.mxu0
    %v551 = vadd.f32 %v209, %v550
    %552 = vmatmul.f32.gmra.mxu0 %v345
    %v553 = vpop.f32.mrf.mxu0
    %v554 = vadd.f32 %v209, %v553
    %555 = vmatmul.f32.gmra.mxu0 %v348
    %v556 = vpop.f32.mrf.mxu0
    %v557 = vadd.f32 %v209, %v556
    %558 = vmatmul.f32.gmra.mxu0 %v351
    %v559 = vpop.f32.mrf.mxu0
    %v560 = vadd.f32 %v209, %v559
    %561 = vmatmul.f32.gmra.mxu0 %v354
    %v562 = vpop.f32.mrf.mxu0
    %v563 = vadd.f32 %v209, %v562
    %564 = vmatmul.f32.gmra.mxu0 %v357
    %v565 = vpop.f32.mrf.mxu0
    %v566 = vadd.f32 %v209, %v565
    %567 = vmatmul.f32.gmra.mxu0 %v360
    %v568 = vpop.f32.mrf.mxu0
    %v569 = vadd.f32 %v209, %v568
    %570 = vmatmul.f32.gmra.mxu0 %v363
    %v571 = vpop.f32.mrf.mxu0
    %v572 = vadd.f32 %v209, %v571
    %573 = vmatmul.f32.gmra.mxu0 %v366
    %v574 = vpop.f32.mrf.mxu0
    %v575 = vadd.f32 %v209, %v574
    %576 = vmatmul.f32.gmra.mxu0 %v369
    %v577 = vpop.f32.mrf.mxu0
    %v578 = vadd.f32 %v209, %v577
    %579 = vmatmul.f32.gmra.mxu0 %v372
    %v580 = vpop.f32.mrf.mxu0
    %v581 = vadd.f32 %v209, %v580
    %582 = vmatmul.f32.gmra.mxu0 %v375
    %v583 = vpop.f32.mrf.mxu0
    %v584 = vadd.f32 %v209, %v583
    %585 = vmatmul.f32.gmra.mxu0 %v378
    %v586 = vpop.f32.mrf.mxu0
    %v587 = vadd.f32 %v209, %v586
    %588 = vmatmul.f32.gmra.mxu0 %v381
    %v589 = vpop.f32.mrf.mxu0
    %v590 = vadd.f32 %v209, %v589
    %591 = vmatmul.f32.gmra.mxu0 %v384
    %v592 = vpop.f32.mrf.mxu0
    %v593 = vadd.f32 %v209, %v592
    %594 = vmatmul.f32.gmra.mxu0 %v387
    %v595 = vpop.f32.mrf.mxu0
    %v596 = vadd.f32 %v209, %v595
    %597 = vmatmul.f32.gmra.mxu0 %v390
    %v598 = vpop.f32.mrf.mxu0
    %v599 = vadd.f32 %v209, %v598
    %600 = vmatmul.f32.gmra.mxu0 %v393
    %v601 = vpop.f32.mrf.mxu0
    %v602 = vadd.f32 %v209, %v601
    %603 = vmatmul.f32.gmra.mxu0 %v396
    %v604 = vpop.f32.mrf.mxu0
    %v605 = vadd.f32 %v209, %v604
    %606 = vmatmul.f32.gmra.mxu0 %v399
    %v607 = vpop.f32.mrf.mxu0
    %v608 = vadd.f32 %v209, %v607
    %609 = vmatmul.f32.gmra.mxu0 %v402
    %v610 = vpop.f32.mrf.mxu0
    %v611 = vadd.f32 %v209, %v610
    %612 = vdwg.mxu0
    %v613 = vmax.f32 %v422, 0.0
    %v614 = vmax.f32 %v425, 0.0
    %v615 = vmax.f32 %v428, 0.0
    %v616 = vmax.f32 %v431, 0.0
    %v617 = vmax.f32 %v434, 0.0
    %v618 = vmax.f32 %v437, 0.0
    %v619 = vmax.f32 %v440, 0.0
    %v620 = vmax.f32 %v443, 0.0
    %v621 = vmax.f32 %v446, 0.0
    %v622 = vmax.f32 %v449, 0.0
    %v623 = vmax.f32 %v452, 0.0
    %v624 = vmax.f32 %v455, 0.0
    %v625 = vmax.f32 %v458, 0.0
    %v626 = vmax.f32 %v461, 0.0
    %v627 = vmax.f32 %v464, 0.0
    %v628 = vmax.f32 %v467, 0.0
    %v629 = vmax.f32 %v470, 0.0
    %v630 = vmax.f32 %v473, 0.0
    %v631 = vmax.f32 %v476, 0.0
    %v632 = vmax.f32 %v479, 0.0
    %v633 = vmax.f32 %v482, 0.0
    %v634 = vmax.f32 %v485, 0.0
    %v635 = vmax.f32 %v488, 0.0
    %v636 = vmax.f32 %v491, 0.0
    %v637 = vmax.f32 %v494, 0.0
    %v638 = vmax.f32 %v497, 0.0
    %v639 = vmax.f32 %v500, 0.0
    %v640 = vmax.f32 %v503, 0.0
    %v641 = vmax.f32 %v506, 0.0
    %v642 = vmax.f32 %v509, 0.0
    %v643 = vmax.f32 %v512, 0.0
    %v644 = vmax.f32 %v515, 0.0
    %v645 = vmax.f32 %v518, 0.0
    %v646 = vmax.f32 %v521, 0.0
    %v647 = vmax.f32 %v524, 0.0
    %v648 = vmax.f32 %v527, 0.0
    %v649 = vmax.f32 %v530, 0.0
    %v650 = vmax.f32 %v533, 0.0
    %v651 = vmax.f32 %v536, 0.0
    %v652 = vmax.f32 %v539, 0.0
    %v653 = vmax.f32 %v542, 0.0
    %v654 = vmax.f32 %v545, 0.0
    %v655 = vmax.f32 %v548, 0.0
    %v656 = vmax.f32 %v551, 0.0
    %v657 = vmax.f32 %v554, 0.0
    %v658 = vmax.f32 %v557, 0.0
    %v659 = vmax.f32 %v560, 0.0
    %v660 = vmax.f32 %v563, 0.0
    %v661 = vmax.f32 %v566, 0.0
    %v662 = vmax.f32 %v569, 0.0
    %v663 = vmax.f32 %v572, 0.0
    %v664 = vmax.f32 %v575, 0.0
    %v665 = vmax.f32 %v578, 0.0
    %v666 = vmax.f32 %v581, 0.0
    %v667 = vmax.f32 %v584, 0.0
    %v668 = vmax.f32 %v587, 0.0
    %v669 = vmax.f32 %v590, 0.0
    %v670 = vmax.f32 %v593, 0.0
    %v671 = vmax.f32 %v596, 0.0
    %v672 = vmax.f32 %v599, 0.0
    %v673 = vmax.f32 %v602, 0.0
    %v674 = vmax.f32 %v605, 0.0
    %v675 = vmax.f32 %v608, 0.0
    %v676 = vmax.f32 %v611, 0.0
    %v677 = vld [vmem:[#allocation5] sm:$0xff]
    %v678 = vld [vmem:[#allocation5 + $0x8] sm:$0xff]
    %v679 = vld [vmem:[#allocation5 + $0x10] sm:$0xff]
    %v680 = vld [vmem:[#allocation5 + $0x18] sm:$0xff]
    %v681 = vld [vmem:[#allocation5 + $0x20] sm:$0xff]
    %v682 = vld [vmem:[#allocation5 + $0x28] sm:$0xff]
    %v683 = vld [vmem:[#allocation5 + $0x30] sm:$0xff]
    %v684 = vld [vmem:[#allocation5 + $0x38] sm:$0xff]
    %v685 = vld [vmem:[%s4] sm:$0x1]
    %v687 = vperm.slane %v685, 0
    %v690 = vsel %vm211, %v613, 0
    %v693 = vsel %vm211, %v614, 0
    %v696 = vsel %vm211, %v615, 0
    %v699 = vsel %vm211, %v616, 0
    %v702 = vsel %vm211, %v617, 0
    %v705 = vsel %vm211, %v618, 0
    %v708 = vsel %vm211, %v619, 0
    %v711 = vsel %vm211, %v620, 0
    %v714 = vsel %vm211, %v621, 0
    %v717 = vsel %vm211, %v622, 0
    %v720 = vsel %vm211, %v623, 0
    %v723 = vsel %vm211, %v624, 0
    %v726 = vsel %vm211, %v625, 0
    %v729 = vsel %vm211, %v626, 0
    %v732 = vsel %vm211, %v627, 0
    %v735 = vsel %vm211, %v628, 0
    %v738 = vsel %vm211, %v629, 0
    %v741 = vsel %vm211, %v630, 0
    %v744 = vsel %vm211, %v631, 0
    %v747 = vsel %vm211, %v632, 0
    %v750 = vsel %vm211, %v633, 0
    %v753 = vsel %vm211, %v634, 0
    %v756 = vsel %vm211, %v635, 0
    %v759 = vsel %vm211, %v636, 0
    %v762 = vsel %vm211, %v637, 0
    %v765 = vsel %vm211, %v638, 0
    %v768 = vsel %vm211, %v639, 0
    %v771 = vsel %vm211, %v640, 0
    %v774 = vsel %vm211, %v641, 0
    %v777 = vsel %vm211, %v642, 0
    %v780 = vsel %vm211, %v643, 0
    %v783 = vsel %vm211, %v644, 0
    %v786 = vsel %vm211, %v645, 0
    %v789 = vsel %vm211, %v646, 0
    %v792 = vsel %vm211, %v647, 0
    %v795 = vsel %vm211, %v648, 0
    %v798 = vsel %vm211, %v649, 0
    %v801 = vsel %vm211, %v650, 0
    %v804 = vsel %vm211, %v651, 0
    %v807 = vsel %vm211, %v652, 0
    %v810 = vsel %vm211, %v653, 0
    %v813 = vsel %vm211, %v654, 0
    %v816 = vsel %vm211, %v655, 0
    %v819 = vsel %vm211, %v656, 0
    %v822 = vsel %vm211, %v657, 0
    %v825 = vsel %vm211, %v658, 0
    %v828 = vsel %vm211, %v659, 0
    %v831 = vsel %vm211, %v660, 0
    %v834 = vsel %vm211, %v661, 0
    %v837 = vsel %vm211, %v662, 0
    %v840 = vsel %vm211, %v663, 0
    %v843 = vsel %vm211, %v664, 0
    %v846 = vsel %vm211, %v665, 0
    %v849 = vsel %vm211, %v666, 0
    %v852 = vsel %vm211, %v667, 0
    %v855 = vsel %vm211, %v668, 0
    %v858 = vsel %vm211, %v669, 0
    %v861 = vsel %vm211, %v670, 0
    %v864 = vsel %vm211, %v671, 0
    %v867 = vsel %vm211, %v672, 0
    %v870 = vsel %vm211, %v673, 0
    %v873 = vsel %vm211, %v674, 0
    %v876 = vsel %vm211, %v675, 0
    %v879 = vsel %vm211, %v676, 0
    %881 = vmatpush.msra.mxu0 0.0
    %882 = vmatpush.msra.mxu0 0.0
    %883 = vmatpush.msra.mxu0 0.0
    %884 = vmatpush.msra.mxu0 0.0
    %885 = vmatpush.msra.mxu0 0.0
    %886 = vmatpush.msra.mxu0 0.0
    %887 = vmatpush.msra.mxu0 0.0
    %888 = vmatpush.msra.mxu0 0.0
    %889 = vmatpush.msra.mxu0 %v684
    %890 = vmatpush.msra.mxu0 %v683
    %891 = vmatpush.msra.mxu0 %v682
    %892 = vmatpush.msra.mxu0 %v681
    %893 = vmatpush.msra.mxu0 %v680
    %894 = vmatpush.msra.mxu0 %v679
    %895 = vmatpush.msra.mxu0 %v678
    %896 = vmatpush.msra.mxu0 %v677
    %897 = vmatmul.f32.gmra.mxu0 %v690
    %v898 = vpop.f32.mrf.mxu0
    %v899 = vadd.f32 %v687, %v898
    %900 = vmatmul.f32.gmra.mxu0 %v693
    %v901 = vpop.f32.mrf.mxu0
    %v902 = vadd.f32 %v687, %v901
    %903 = vmatmul.f32.gmra.mxu0 %v696
    %v904 = vpop.f32.mrf.mxu0
    %v905 = vadd.f32 %v687, %v904
    %906 = vmatmul.f32.gmra.mxu0 %v699
    %v907 = vpop.f32.mrf.mxu0
    %v908 = vadd.f32 %v687, %v907
    %909 = vmatmul.f32.gmra.mxu0 %v702
    %v910 = vpop.f32.mrf.mxu0
    %v911 = vadd.f32 %v687, %v910
    %912 = vmatmul.f32.gmra.mxu0 %v705
    %v913 = vpop.f32.mrf.mxu0
    %v914 = vadd.f32 %v687, %v913
    %915 = vmatmul.f32.gmra.mxu0 %v708
    %v916 = vpop.f32.mrf.mxu0
    %v917 = vadd.f32 %v687, %v916
    %918 = vmatmul.f32.gmra.mxu0 %v711
    %v919 = vpop.f32.mrf.mxu0
    %v920 = vadd.f32 %v687, %v919
    %921 = vmatmul.f32.gmra.mxu0 %v714
    %v922 = vpop.f32.mrf.mxu0
    %v923 = vadd.f32 %v687, %v922
    %924 = vmatmul.f32.gmra.mxu0 %v717
    %v925 = vpop.f32.mrf.mxu0
    %v926 = vadd.f32 %v687, %v925
    %927 = vmatmul.f32.gmra.mxu0 %v720
    %v928 = vpop.f32.mrf.mxu0
    %v929 = vadd.f32 %v687, %v928
    %930 = vmatmul.f32.gmra.mxu0 %v723
    %v931 = vpop.f32.mrf.mxu0
    %v932 = vadd.f32 %v687, %v931
    %933 = vmatmul.f32.gmra.mxu0 %v726
    %v934 = vpop.f32.mrf.mxu0
    %v935 = vadd.f32 %v687, %v934
    %936 = vmatmul.f32.gmra.mxu0 %v729
    %v937 = vpop.f32.mrf.mxu0
    %v938 = vadd.f32 %v687, %v937
    %939 = vmatmul.f32.gmra.mxu0 %v732
    %v940 = vpop.f32.mrf.mxu0
    %v941 = vadd.f32 %v687, %v940
    %942 = vmatmul.f32.gmra.mxu0 %v735
    %v943 = vpop.f32.mrf.mxu0
    %v944 = vadd.f32 %v687, %v943
    %945 = vmatmul.f32.gmra.mxu0 %v738
    %v946 = vpop.f32.mrf.mxu0
    %v947 = vadd.f32 %v687, %v946
    %948 = vmatmul.f32.gmra.mxu0 %v741
    %v949 = vpop.f32.mrf.mxu0
    %v950 = vadd.f32 %v687, %v949
    %951 = vmatmul.f32.gmra.mxu0 %v744
    %v952 = vpop.f32.mrf.mxu0
    %v953 = vadd.f32 %v687, %v952
    %954 = vmatmul.f32.gmra.mxu0 %v747
    %v955 = vpop.f32.mrf.mxu0
    %v956 = vadd.f32 %v687, %v955
    %957 = vmatmul.f32.gmra.mxu0 %v750
    %v958 = vpop.f32.mrf.mxu0
    %v959 = vadd.f32 %v687, %v958
    %960 = vmatmul.f32.gmra.mxu0 %v753
    %v961 = vpop.f32.mrf.mxu0
    %v962 = vadd.f32 %v687, %v961
    %963 = vmatmul.f32.gmra.mxu0 %v756
    %v964 = vpop.f32.mrf.mxu0
    %v965 = vadd.f32 %v687, %v964
    %966 = vmatmul.f32.gmra.mxu0 %v759
    %v967 = vpop.f32.mrf.mxu0
    %v968 = vadd.f32 %v687, %v967
    %969 = vmatmul.f32.gmra.mxu0 %v762
    %v970 = vpop.f32.mrf.mxu0
    %v971 = vadd.f32 %v687, %v970
    %972 = vmatmul.f32.gmra.mxu0 %v765
    %v973 = vpop.f32.mrf.mxu0
    %v974 = vadd.f32 %v687, %v973
    %975 = vmatmul.f32.gmra.mxu0 %v768
    %v976 = vpop.f32.mrf.mxu0
    %v977 = vadd.f32 %v687, %v976
    %978 = vmatmul.f32.gmra.mxu0 %v771
    %v979 = vpop.f32.mrf.mxu0
    %v980 = vadd.f32 %v687, %v979
    %981 = vmatmul.f32.gmra.mxu0 %v774
    %v982 = vpop.f32.mrf.mxu0
    %v983 = vadd.f32 %v687, %v982
    %984 = vmatmul.f32.gmra.mxu0 %v777
    %v985 = vpop.f32.mrf.mxu0
    %v986 = vadd.f32 %v687, %v985
    %987 = vmatmul.f32.gmra.mxu0 %v780
    %v988 = vpop.f32.mrf.mxu0
    %v989 = vadd.f32 %v687, %v988
    %990 = vmatmul.f32.gmra.mxu0 %v783
    %v991 = vpop.f32.mrf.mxu0
    %v992 = vadd.f32 %v687, %v991
    %993 = vmatmul.f32.gmra.mxu0 %v786
    %v994 = vpop.f32.mrf.mxu0
    %v995 = vadd.f32 %v687, %v994
    %996 = vmatmul.f32.gmra.mxu0 %v789
    %v997 = vpop.f32.mrf.mxu0
    %v998 = vadd.f32 %v687, %v997
    %999 = vmatmul.f32.gmra.mxu0 %v792
    %v1000 = vpop.f32.mrf.mxu0
    %v1001 = vadd.f32 %v687, %v1000
    %1002 = vmatmul.f32.gmra.mxu0 %v795
    %v1003 = vpop.f32.mrf.mxu0
    %v1004 = vadd.f32 %v687, %v1003
    %1005 = vmatmul.f32.gmra.mxu0 %v798
    %v1006 = vpop.f32.mrf.mxu0
    %v1007 = vadd.f32 %v687, %v1006
    %1008 = vmatmul.f32.gmra.mxu0 %v801
    %v1009 = vpop.f32.mrf.mxu0
    %v1010 = vadd.f32 %v687, %v1009
    %1011 = vmatmul.f32.gmra.mxu0 %v804
    %v1012 = vpop.f32.mrf.mxu0
    %v1013 = vadd.f32 %v687, %v1012
    %1014 = vmatmul.f32.gmra.mxu0 %v807
    %v1015 = vpop.f32.mrf.mxu0
    %v1016 = vadd.f32 %v687, %v1015
    %1017 = vmatmul.f32.gmra.mxu0 %v810
    %v1018 = vpop.f32.mrf.mxu0
    %v1019 = vadd.f32 %v687, %v1018
    %1020 = vmatmul.f32.gmra.mxu0 %v813
    %v1021 = vpop.f32.mrf.mxu0
    %v1022 = vadd.f32 %v687, %v1021
    %1023 = vmatmul.f32.gmra.mxu0 %v816
    %v1024 = vpop.f32.mrf.mxu0
    %v1025 = vadd.f32 %v687, %v1024
    %1026 = vmatmul.f32.gmra.mxu0 %v819
    %v1027 = vpop.f32.mrf.mxu0
    %v1028 = vadd.f32 %v687, %v1027
    %1029 = vmatmul.f32.gmra.mxu0 %v822
    %v1030 = vpop.f32.mrf.mxu0
    %v1031 = vadd.f32 %v687, %v1030
    %1032 = vmatmul.f32.gmra.mxu0 %v825
    %v1033 = vpop.f32.mrf.mxu0
    %v1034 = vadd.f32 %v687, %v1033
    %1035 = vmatmul.f32.gmra.mxu0 %v828
    %v1036 = vpop.f32.mrf.mxu0
    %v1037 = vadd.f32 %v687, %v1036
    %1038 = vmatmul.f32.gmra.mxu0 %v831
    %v1039 = vpop.f32.mrf.mxu0
    %v1040 = vadd.f32 %v687, %v1039
    %1041 = vmatmul.f32.gmra.mxu0 %v834
    %v1042 = vpop.f32.mrf.mxu0
    %v1043 = vadd.f32 %v687, %v1042
    %1044 = vmatmul.f32.gmra.mxu0 %v837
    %v1045 = vpop.f32.mrf.mxu0
    %v1046 = vadd.f32 %v687, %v1045
    %1047 = vmatmul.f32.gmra.mxu0 %v840
    %v1048 = vpop.f32.mrf.mxu0
    %v1049 = vadd.f32 %v687, %v1048
    %1050 = vmatmul.f32.gmra.mxu0 %v843
    %v1051 = vpop.f32.mrf.mxu0
    %v1052 = vadd.f32 %v687, %v1051
    %1053 = vmatmul.f32.gmra.mxu0 %v846
    %v1054 = vpop.f32.mrf.mxu0
    %v1055 = vadd.f32 %v687, %v1054
    %1056 = vmatmul.f32.gmra.mxu0 %v849
    %v1057 = vpop.f32.mrf.mxu0
    %v1058 = vadd.f32 %v687, %v1057
    %1059 = vmatmul.f32.gmra.mxu0 %v852
    %v1060 = vpop.f32.mrf.mxu0
    %v1061 = vadd.f32 %v687, %v1060
    %1062 = vmatmul.f32.gmra.mxu0 %v855
    %v1063 = vpop.f32.mrf.mxu0
    %v1064 = vadd.f32 %v687, %v1063
    %1065 = vmatmul.f32.gmra.mxu0 %v858
    %v1066 = vpop.f32.mrf.mxu0
    %v1067 = vadd.f32 %v687, %v1066
    %1068 = vmatmul.f32.gmra.mxu0 %v861
    %v1069 = vpop.f32.mrf.mxu0
    %v1070 = vadd.f32 %v687, %v1069
    %1071 = vmatmul.f32.gmra.mxu0 %v864
    %v1072 = vpop.f32.mrf.mxu0
    %v1073 = vadd.f32 %v687, %v1072
    %1074 = vmatmul.f32.gmra.mxu0 %v867
    %v1075 = vpop.f32.mrf.mxu0
    %v1076 = vadd.f32 %v687, %v1075
    %1077 = vmatmul.f32.gmra.mxu0 %v870
    %v1078 = vpop.f32.mrf.mxu0
    %v1079 = vadd.f32 %v687, %v1078
    %1080 = vmatmul.f32.gmra.mxu0 %v873
    %v1081 = vpop.f32.mrf.mxu0
    %v1082 = vadd.f32 %v687, %v1081
    %1083 = vmatmul.f32.gmra.mxu0 %v876
    %v1084 = vpop.f32.mrf.mxu0
    %v1085 = vadd.f32 %v687, %v1084
    %1086 = vmatmul.f32.gmra.mxu0 %v879
    %v1087 = vpop.f32.mrf.mxu0
    %v1088 = vadd.f32 %v687, %v1087
    %1089 = vdwg.mxu0
    %v1090 = vmax.f32 %v899, 0.0
    %v1091 = vmax.f32 %v902, 0.0
    %v1092 = vmax.f32 %v905, 0.0
    %v1093 = vmax.f32 %v908, 0.0
    %v1094 = vmax.f32 %v911, 0.0
    %v1095 = vmax.f32 %v914, 0.0
    %v1096 = vmax.f32 %v917, 0.0
    %v1097 = vmax.f32 %v920, 0.0
    %v1098 = vmax.f32 %v923, 0.0
    %v1099 = vmax.f32 %v926, 0.0
    %v1100 = vmax.f32 %v929, 0.0
    %v1101 = vmax.f32 %v932, 0.0
    %v1102 = vmax.f32 %v935, 0.0
    %v1103 = vmax.f32 %v938, 0.0
    %v1104 = vmax.f32 %v941, 0.0
    %v1105 = vmax.f32 %v944, 0.0
    %v1106 = vmax.f32 %v947, 0.0
    %v1107 = vmax.f32 %v950, 0.0
    %v1108 = vmax.f32 %v953, 0.0
    %v1109 = vmax.f32 %v956, 0.0
    %v1110 = vmax.f32 %v959, 0.0
    %v1111 = vmax.f32 %v962, 0.0
    %v1112 = vmax.f32 %v965, 0.0
    %v1113 = vmax.f32 %v968, 0.0
    %v1114 = vmax.f32 %v971, 0.0
    %v1115 = vmax.f32 %v974, 0.0
    %v1116 = vmax.f32 %v977, 0.0
    %v1117 = vmax.f32 %v980, 0.0
    %v1118 = vmax.f32 %v983, 0.0
    %v1119 = vmax.f32 %v986, 0.0
    %v1120 = vmax.f32 %v989, 0.0
    %v1121 = vmax.f32 %v992, 0.0
    %v1122 = vmax.f32 %v995, 0.0
    %v1123 = vmax.f32 %v998, 0.0
    %v1124 = vmax.f32 %v1001, 0.0
    %v1125 = vmax.f32 %v1004, 0.0
    %v1126 = vmax.f32 %v1007, 0.0
    %v1127 = vmax.f32 %v1010, 0.0
    %v1128 = vmax.f32 %v1013, 0.0
    %v1129 = vmax.f32 %v1016, 0.0
    %v1130 = vmax.f32 %v1019, 0.0
    %v1131 = vmax.f32 %v1022, 0.0
    %v1132 = vmax.f32 %v1025, 0.0
    %v1133 = vmax.f32 %v1028, 0.0
    %v1134 = vmax.f32 %v1031, 0.0
    %v1135 = vmax.f32 %v1034, 0.0
    %v1136 = vmax.f32 %v1037, 0.0
    %v1137 = vmax.f32 %v1040, 0.0
    %v1138 = vmax.f32 %v1043, 0.0
    %v1139 = vmax.f32 %v1046, 0.0
    %v1140 = vmax.f32 %v1049, 0.0
    %v1141 = vmax.f32 %v1052, 0.0
    %v1142 = vmax.f32 %v1055, 0.0
    %v1143 = vmax.f32 %v1058, 0.0
    %v1144 = vmax.f32 %v1061, 0.0
    %v1145 = vmax.f32 %v1064, 0.0
    %v1146 = vmax.f32 %v1067, 0.0
    %v1147 = vmax.f32 %v1070, 0.0
    %v1148 = vmax.f32 %v1073, 0.0
    %v1149 = vmax.f32 %v1076, 0.0
    %v1150 = vmax.f32 %v1079, 0.0
    %v1151 = vmax.f32 %v1082, 0.0
    %v1152 = vmax.f32 %v1085, 0.0
    %v1153 = vmax.f32 %v1088, 0.0
    %v1154 = vld [vmem:[#allocation7] sm:$0xff]
    %v1155 = vld [vmem:[#allocation7 + $0x8] sm:$0xff]
    %v1156 = vld [vmem:[#allocation7 + $0x10] sm:$0xff]
    %v1157 = vld [vmem:[#allocation7 + $0x18] sm:$0xff]
    %v1158 = vld [vmem:[#allocation7 + $0x20] sm:$0xff]
    %v1159 = vld [vmem:[#allocation7 + $0x28] sm:$0xff]
    %v1160 = vld [vmem:[#allocation7 + $0x30] sm:$0xff]
    %v1161 = vld [vmem:[#allocation7 + $0x38] sm:$0xff]
    %v1162 = vld [vmem:[#allocation8] sm:$0x1]
    %v1164 = vperm.slane %v1162, 0
    %v1167 = vsel %vm211, %v1090, 0
    %v1170 = vsel %vm211, %v1091, 0
    %v1173 = vsel %vm211, %v1092, 0
    %v1176 = vsel %vm211, %v1093, 0
    %v1179 = vsel %vm211, %v1094, 0
    %v1182 = vsel %vm211, %v1095, 0
    %v1185 = vsel %vm211, %v1096, 0
    %v1188 = vsel %vm211, %v1097, 0
    %v1191 = vsel %vm211, %v1098, 0
    %v1194 = vsel %vm211, %v1099, 0
    %v1197 = vsel %vm211, %v1100, 0
    %v1200 = vsel %vm211, %v1101, 0
    %v1203 = vsel %vm211, %v1102, 0
    %v1206 = vsel %vm211, %v1103, 0
    %v1209 = vsel %vm211, %v1104, 0
    %v1212 = vsel %vm211, %v1105, 0
    %v1215 = vsel %vm211, %v1106, 0
    %v1218 = vsel %vm211, %v1107, 0
    %v1221 = vsel %vm211, %v1108, 0
    %v1224 = vsel %vm211, %v1109, 0
    %v1227 = vsel %vm211, %v1110, 0
    %v1230 = vsel %vm211, %v1111, 0
    %v1233 = vsel %vm211, %v1112, 0
    %v1236 = vsel %vm211, %v1113, 0
    %v1239 = vsel %vm211, %v1114, 0
    %v1242 = vsel %vm211, %v1115, 0
    %v1245 = vsel %vm211, %v1116, 0
    %v1248 = vsel %vm211, %v1117, 0
    %v1251 = vsel %vm211, %v1118, 0
    %v1254 = vsel %vm211, %v1119, 0
    %v1257 = vsel %vm211, %v1120, 0
    %v1260 = vsel %vm211, %v1121, 0
    %v1263 = vsel %vm211, %v1122, 0
    %v1266 = vsel %vm211, %v1123, 0
    %v1269 = vsel %vm211, %v1124, 0
    %v1272 = vsel %vm211, %v1125, 0
    %v1275 = vsel %vm211, %v1126, 0
    %v1278 = vsel %vm211, %v1127, 0
    %v1281 = vsel %vm211, %v1128, 0
    %v1284 = vsel %vm211, %v1129, 0
    %v1287 = vsel %vm211, %v1130, 0
    %v1290 = vsel %vm211, %v1131, 0
    %v1293 = vsel %vm211, %v1132, 0
    %v1296 = vsel %vm211, %v1133, 0
    %v1299 = vsel %vm211, %v1134, 0
    %v1302 = vsel %vm211, %v1135, 0
    %v1305 = vsel %vm211, %v1136, 0
    %v1308 = vsel %vm211, %v1137, 0
    %v1311 = vsel %vm211, %v1138, 0
    %v1314 = vsel %vm211, %v1139, 0
    %v1317 = vsel %vm211, %v1140, 0
    %v1320 = vsel %vm211, %v1141, 0
    %v1323 = vsel %vm211, %v1142, 0
    %v1326 = vsel %vm211, %v1143, 0
    %v1329 = vsel %vm211, %v1144, 0
    %v1332 = vsel %vm211, %v1145, 0
    %v1335 = vsel %vm211, %v1146, 0
    %v1338 = vsel %vm211, %v1147, 0
    %v1341 = vsel %vm211, %v1148, 0
    %v1344 = vsel %vm211, %v1149, 0
    %v1347 = vsel %vm211, %v1150, 0
    %v1350 = vsel %vm211, %v1151, 0
    %v1353 = vsel %vm211, %v1152, 0
    %v1356 = vsel %vm211, %v1153, 0
    %1358 = vmatpush.msra.mxu0 0.0
    %1359 = vmatpush.msra.mxu0 0.0
    %1360 = vmatpush.msra.mxu0 0.0
    %1361 = vmatpush.msra.mxu0 0.0
    %1362 = vmatpush.msra.mxu0 0.0
    %1363 = vmatpush.msra.mxu0 0.0
    %1364 = vmatpush.msra.mxu0 0.0
    %1365 = vmatpush.msra.mxu0 0.0
    %1366 = vmatpush.msra.mxu0 %v1161
    %1367 = vmatpush.msra.mxu0 %v1160
    %1368 = vmatpush.msra.mxu0 %v1159
    %1369 = vmatpush.msra.mxu0 %v1158
    %1370 = vmatpush.msra.mxu0 %v1157
    %1371 = vmatpush.msra.mxu0 %v1156
    %1372 = vmatpush.msra.mxu0 %v1155
    %1373 = vmatpush.msra.mxu0 %v1154
    %1374 = vmatmul.f32.gmra.mxu0 %v1167
    %v1375 = vpop.f32.mrf.mxu0
    %v1376 = vadd.f32 %v1164, %v1375
    %1377 = vmatmul.f32.gmra.mxu0 %v1170
    %v1378 = vpop.f32.mrf.mxu0
    %v1379 = vadd.f32 %v1164, %v1378
    %1380 = vmatmul.f32.gmra.mxu0 %v1173
    %v1381 = vpop.f32.mrf.mxu0
    %v1382 = vadd.f32 %v1164, %v1381
    %1383 = vmatmul.f32.gmra.mxu0 %v1176
    %v1384 = vpop.f32.mrf.mxu0
    %v1385 = vadd.f32 %v1164, %v1384
    %1386 = vmatmul.f32.gmra.mxu0 %v1179
    %v1387 = vpop.f32.mrf.mxu0
    %v1388 = vadd.f32 %v1164, %v1387
    %1389 = vmatmul.f32.gmra.mxu0 %v1182
    %v1390 = vpop.f32.mrf.mxu0
    %v1391 = vadd.f32 %v1164, %v1390
    %1392 = vmatmul.f32.gmra.mxu0 %v1185
    %v1393 = vpop.f32.mrf.mxu0
    %v1394 = vadd.f32 %v1164, %v1393
    %1395 = vmatmul.f32.gmra.mxu0 %v1188
    %v1396 = vpop.f32.mrf.mxu0
    %v1397 = vadd.f32 %v1164, %v1396
    %1398 = vmatmul.f32.gmra.mxu0 %v1191
    %v1399 = vpop.f32.mrf.mxu0
    %v1400 = vadd.f32 %v1164, %v1399
    %1401 = vmatmul.f32.gmra.mxu0 %v1194
    %v1402 = vpop.f32.mrf.mxu0
    %v1403 = vadd.f32 %v1164, %v1402
    %1404 = vmatmul.f32.gmra.mxu0 %v1197
    %v1405 = vpop.f32.mrf.mxu0
    %v1406 = vadd.f32 %v1164, %v1405
    %1407 = vmatmul.f32.gmra.mxu0 %v1200
    %v1408 = vpop.f32.mrf.mxu0
    %v1409 = vadd.f32 %v1164, %v1408
    %1410 = vmatmul.f32.gmra.mxu0 %v1203
    %v1411 = vpop.f32.mrf.mxu0
    %v1412 = vadd.f32 %v1164, %v1411
    %1413 = vmatmul.f32.gmra.mxu0 %v1206
    %v1414 = vpop.f32.mrf.mxu0
    %v1415 = vadd.f32 %v1164, %v1414
    %1416 = vmatmul.f32.gmra.mxu0 %v1209
    %v1417 = vpop.f32.mrf.mxu0
    %v1418 = vadd.f32 %v1164, %v1417
    %1419 = vmatmul.f32.gmra.mxu0 %v1212
    %v1420 = vpop.f32.mrf.mxu0
    %v1421 = vadd.f32 %v1164, %v1420
    %1422 = vmatmul.f32.gmra.mxu0 %v1215
    %v1423 = vpop.f32.mrf.mxu0
    %v1424 = vadd.f32 %v1164, %v1423
    %1425 = vmatmul.f32.gmra.mxu0 %v1218
    %v1426 = vpop.f32.mrf.mxu0
    %v1427 = vadd.f32 %v1164, %v1426
    %1428 = vmatmul.f32.gmra.mxu0 %v1221
    %v1429 = vpop.f32.mrf.mxu0
    %v1430 = vadd.f32 %v1164, %v1429
    %1431 = vmatmul.f32.gmra.mxu0 %v1224
    %v1432 = vpop.f32.mrf.mxu0
    %v1433 = vadd.f32 %v1164, %v1432
    %1434 = vmatmul.f32.gmra.mxu0 %v1227
    %v1435 = vpop.f32.mrf.mxu0
    %v1436 = vadd.f32 %v1164, %v1435
    %1437 = vmatmul.f32.gmra.mxu0 %v1230
    %v1438 = vpop.f32.mrf.mxu0
    %v1439 = vadd.f32 %v1164, %v1438
    %1440 = vmatmul.f32.gmra.mxu0 %v1233
    %v1441 = vpop.f32.mrf.mxu0
    %v1442 = vadd.f32 %v1164, %v1441
    %1443 = vmatmul.f32.gmra.mxu0 %v1236
    %v1444 = vpop.f32.mrf.mxu0
    %v1445 = vadd.f32 %v1164, %v1444
    %1446 = vmatmul.f32.gmra.mxu0 %v1239
    %v1447 = vpop.f32.mrf.mxu0
    %v1448 = vadd.f32 %v1164, %v1447
    %1449 = vmatmul.f32.gmra.mxu0 %v1242
    %v1450 = vpop.f32.mrf.mxu0
    %v1451 = vadd.f32 %v1164, %v1450
    %1452 = vmatmul.f32.gmra.mxu0 %v1245
    %v1453 = vpop.f32.mrf.mxu0
    %v1454 = vadd.f32 %v1164, %v1453
    %1455 = vmatmul.f32.gmra.mxu0 %v1248
    %v1456 = vpop.f32.mrf.mxu0
    %v1457 = vadd.f32 %v1164, %v1456
    %1458 = vmatmul.f32.gmra.mxu0 %v1251
    %v1459 = vpop.f32.mrf.mxu0
    %v1460 = vadd.f32 %v1164, %v1459
    %1461 = vmatmul.f32.gmra.mxu0 %v1254
    %v1462 = vpop.f32.mrf.mxu0
    %v1463 = vadd.f32 %v1164, %v1462
    %1464 = vmatmul.f32.gmra.mxu0 %v1257
    %v1465 = vpop.f32.mrf.mxu0
    %v1466 = vadd.f32 %v1164, %v1465
    %1467 = vmatmul.f32.gmra.mxu0 %v1260
    %v1468 = vpop.f32.mrf.mxu0
    %v1469 = vadd.f32 %v1164, %v1468
    %1470 = vmatmul.f32.gmra.mxu0 %v1263
    %v1471 = vpop.f32.mrf.mxu0
    %v1472 = vadd.f32 %v1164, %v1471
    %1473 = vmatmul.f32.gmra.mxu0 %v1266
    %v1474 = vpop.f32.mrf.mxu0
    %v1475 = vadd.f32 %v1164, %v1474
    %1476 = vmatmul.f32.gmra.mxu0 %v1269
    %v1477 = vpop.f32.mrf.mxu0
    %v1478 = vadd.f32 %v1164, %v1477
    %1479 = vmatmul.f32.gmra.mxu0 %v1272
    %v1480 = vpop.f32.mrf.mxu0
    %v1481 = vadd.f32 %v1164, %v1480
    %1482 = vmatmul.f32.gmra.mxu0 %v1275
    %v1483 = vpop.f32.mrf.mxu0
    %v1484 = vadd.f32 %v1164, %v1483
    %1485 = vmatmul.f32.gmra.mxu0 %v1278
    %v1486 = vpop.f32.mrf.mxu0
    %v1487 = vadd.f32 %v1164, %v1486
    %1488 = vmatmul.f32.gmra.mxu0 %v1281
    %v1489 = vpop.f32.mrf.mxu0
    %v1490 = vadd.f32 %v1164, %v1489
    %1491 = vmatmul.f32.gmra.mxu0 %v1284
    %v1492 = vpop.f32.mrf.mxu0
    %v1493 = vadd.f32 %v1164, %v1492
    %1494 = vmatmul.f32.gmra.mxu0 %v1287
    %v1495 = vpop.f32.mrf.mxu0
    %v1496 = vadd.f32 %v1164, %v1495
    %1497 = vmatmul.f32.gmra.mxu0 %v1290
    %v1498 = vpop.f32.mrf.mxu0
    %v1499 = vadd.f32 %v1164, %v1498
    %1500 = vmatmul.f32.gmra.mxu0 %v1293
    %v1501 = vpop.f32.mrf.mxu0
    %v1502 = vadd.f32 %v1164, %v1501
    %1503 = vmatmul.f32.gmra.mxu0 %v1296
    %v1504 = vpop.f32.mrf.mxu0
    %v1505 = vadd.f32 %v1164, %v1504
    %1506 = vmatmul.f32.gmra.mxu0 %v1299
    %v1507 = vpop.f32.mrf.mxu0
    %v1508 = vadd.f32 %v1164, %v1507
    %1509 = vmatmul.f32.gmra.mxu0 %v1302
    %v1510 = vpop.f32.mrf.mxu0
    %v1511 = vadd.f32 %v1164, %v1510
    %1512 = vmatmul.f32.gmra.mxu0 %v1305
    %v1513 = vpop.f32.mrf.mxu0
    %v1514 = vadd.f32 %v1164, %v1513
    %1515 = vmatmul.f32.gmra.mxu0 %v1308
    %v1516 = vpop.f32.mrf.mxu0
    %v1517 = vadd.f32 %v1164, %v1516
    %1518 = vmatmul.f32.gmra.mxu0 %v1311
    %v1519 = vpop.f32.mrf.mxu0
    %v1520 = vadd.f32 %v1164, %v1519
    %1521 = vmatmul.f32.gmra.mxu0 %v1314
    %v1522 = vpop.f32.mrf.mxu0
    %v1523 = vadd.f32 %v1164, %v1522
    %1524 = vmatmul.f32.gmra.mxu0 %v1317
    %v1525 = vpop.f32.mrf.mxu0
    %v1526 = vadd.f32 %v1164, %v1525
    %1527 = vmatmul.f32.gmra.mxu0 %v1320
    %v1528 = vpop.f32.mrf.mxu0
    %v1529 = vadd.f32 %v1164, %v1528
    %1530 = vmatmul.f32.gmra.mxu0 %v1323
    %v1531 = vpop.f32.mrf.mxu0
    %v1532 = vadd.f32 %v1164, %v1531
    %1533 = vmatmul.f32.gmra.mxu0 %v1326
    %v1534 = vpop.f32.mrf.mxu0
    %v1535 = vadd.f32 %v1164, %v1534
    %1536 = vmatmul.f32.gmra.mxu0 %v1329
    %v1537 = vpop.f32.mrf.mxu0
    %v1538 = vadd.f32 %v1164, %v1537
    %1539 = vmatmul.f32.gmra.mxu0 %v1332
    %v1540 = vpop.f32.mrf.mxu0
    %v1541 = vadd.f32 %v1164, %v1540
    %1542 = vmatmul.f32.gmra.mxu0 %v1335
    %v1543 = vpop.f32.mrf.mxu0
    %v1544 = vadd.f32 %v1164, %v1543
    %1545 = vmatmul.f32.gmra.mxu0 %v1338
    %v1546 = vpop.f32.mrf.mxu0
    %v1547 = vadd.f32 %v1164, %v1546
    %1548 = vmatmul.f32.gmra.mxu0 %v1341
    %v1549 = vpop.f32.mrf.mxu0
    %v1550 = vadd.f32 %v1164, %v1549
    %1551 = vmatmul.f32.gmra.mxu0 %v1344
    %v1552 = vpop.f32.mrf.mxu0
    %v1553 = vadd.f32 %v1164, %v1552
    %1554 = vmatmul.f32.gmra.mxu0 %v1347
    %v1555 = vpop.f32.mrf.mxu0
    %v1556 = vadd.f32 %v1164, %v1555
    %1557 = vmatmul.f32.gmra.mxu0 %v1350
    %v1558 = vpop.f32.mrf.mxu0
    %v1559 = vadd.f32 %v1164, %v1558
    %1560 = vmatmul.f32.gmra.mxu0 %v1353
    %v1561 = vpop.f32.mrf.mxu0
    %v1562 = vadd.f32 %v1164, %v1561
    %1563 = vmatmul.f32.gmra.mxu0 %v1356
    %v1564 = vpop.f32.mrf.mxu0
    %v1565 = vadd.f32 %v1164, %v1564
    %1566 = vdwg.mxu0
    %v1567 = vmax.f32 %v1376, 0.0
    %v1568 = vmax.f32 %v1379, 0.0
    %v1569 = vmax.f32 %v1382, 0.0
    %v1570 = vmax.f32 %v1385, 0.0
    %v1571 = vmax.f32 %v1388, 0.0
    %v1572 = vmax.f32 %v1391, 0.0
    %v1573 = vmax.f32 %v1394, 0.0
    %v1574 = vmax.f32 %v1397, 0.0
    %v1575 = vmax.f32 %v1400, 0.0
    %v1576 = vmax.f32 %v1403, 0.0
    %v1577 = vmax.f32 %v1406, 0.0
    %v1578 = vmax.f32 %v1409, 0.0
    %v1579 = vmax.f32 %v1412, 0.0
    %v1580 = vmax.f32 %v1415, 0.0
    %v1581 = vmax.f32 %v1418, 0.0
    %v1582 = vmax.f32 %v1421, 0.0
    %v1583 = vmax.f32 %v1424, 0.0
    %v1584 = vmax.f32 %v1427, 0.0
    %v1585 = vmax.f32 %v1430, 0.0
    %v1586 = vmax.f32 %v1433, 0.0
    %v1587 = vmax.f32 %v1436, 0.0
    %v1588 = vmax.f32 %v1439, 0.0
    %v1589 = vmax.f32 %v1442, 0.0
    %v1590 = vmax.f32 %v1445, 0.0
    %v1591 = vmax.f32 %v1448, 0.0
    %v1592 = vmax.f32 %v1451, 0.0
    %v1593 = vmax.f32 %v1454, 0.0
    %v1594 = vmax.f32 %v1457, 0.0
    %v1595 = vmax.f32 %v1460, 0.0
    %v1596 = vmax.f32 %v1463, 0.0
    %v1597 = vmax.f32 %v1466, 0.0
    %v1598 = vmax.f32 %v1469, 0.0
    %v1599 = vmax.f32 %v1472, 0.0
    %v1600 = vmax.f32 %v1475, 0.0
    %v1601 = vmax.f32 %v1478, 0.0
    %v1602 = vmax.f32 %v1481, 0.0
    %v1603 = vmax.f32 %v1484, 0.0
    %v1604 = vmax.f32 %v1487, 0.0
    %v1605 = vmax.f32 %v1490, 0.0
    %v1606 = vmax.f32 %v1493, 0.0
    %v1607 = vmax.f32 %v1496, 0.0
    %v1608 = vmax.f32 %v1499, 0.0
    %v1609 = vmax.f32 %v1502, 0.0
    %v1610 = vmax.f32 %v1505, 0.0
    %v1611 = vmax.f32 %v1508, 0.0
    %v1612 = vmax.f32 %v1511, 0.0
    %v1613 = vmax.f32 %v1514, 0.0
    %v1614 = vmax.f32 %v1517, 0.0
    %v1615 = vmax.f32 %v1520, 0.0
    %v1616 = vmax.f32 %v1523, 0.0
    %v1617 = vmax.f32 %v1526, 0.0
    %v1618 = vmax.f32 %v1529, 0.0
    %v1619 = vmax.f32 %v1532, 0.0
    %v1620 = vmax.f32 %v1535, 0.0
    %v1621 = vmax.f32 %v1538, 0.0
    %v1622 = vmax.f32 %v1541, 0.0
    %v1623 = vmax.f32 %v1544, 0.0
    %v1624 = vmax.f32 %v1547, 0.0
    %v1625 = vmax.f32 %v1550, 0.0
    %v1626 = vmax.f32 %v1553, 0.0
    %v1627 = vmax.f32 %v1556, 0.0
    %v1628 = vmax.f32 %v1559, 0.0
    %v1629 = vmax.f32 %v1562, 0.0
    %v1630 = vmax.f32 %v1565, 0.0
    %v1631 = vsel %vm211, %v1567, 0.0
    %v1632 = vsel %vm211, %v1568, 0.0
    %v1633 = vadd.f32 %v1631, %v1632
    %v1634 = vsel %vm211, %v1569, 0.0
    %v1635 = vadd.f32 %v1633, %v1634
    %v1636 = vsel %vm211, %v1570, 0.0
    %v1637 = vadd.f32 %v1635, %v1636
    %v1638 = vsel %vm211, %v1571, 0.0
    %v1639 = vadd.f32 %v1637, %v1638
    %v1640 = vsel %vm211, %v1572, 0.0
    %v1641 = vadd.f32 %v1639, %v1640
    %v1642 = vsel %vm211, %v1573, 0.0
    %v1643 = vadd.f32 %v1641, %v1642
    %v1644 = vsel %vm211, %v1574, 0.0
    %v1645 = vadd.f32 %v1643, %v1644
    %v1646 = vrot.slane %v1645, 4
    %v1647 = vadd.f32 %v1645, %v1646
    %v1648 = vrot.slane %v1647, 2
    %v1649 = vadd.f32 %v1647, %v1648
    %v1650 = vrot.slane %v1649, 1
    %v1651 = vadd.f32 %v1649, %v1650
    %v1652 = vsel %vm211, %v1575, 0.0
    %v1653 = vsel %vm211, %v1576, 0.0
    %v1654 = vadd.f32 %v1652, %v1653
    %v1655 = vsel %vm211, %v1577, 0.0
    %v1656 = vadd.f32 %v1654, %v1655
    %v1657 = vsel %vm211, %v1578, 0.0
    %v1658 = vadd.f32 %v1656, %v1657
    %v1659 = vsel %vm211, %v1579, 0.0
    %v1660 = vadd.f32 %v1658, %v1659
    %v1661 = vsel %vm211, %v1580, 0.0
    %v1662 = vadd.f32 %v1660, %v1661
    %v1663 = vsel %vm211, %v1581, 0.0
    %v1664 = vadd.f32 %v1662, %v1663
    %v1665 = vsel %vm211, %v1582, 0.0
    %v1666 = vadd.f32 %v1664, %v1665
    %v1667 = vrot.slane %v1666, 4
    %v1668 = vadd.f32 %v1666, %v1667
    %v1669 = vrot.slane %v1668, 2
    %v1670 = vadd.f32 %v1668, %v1669
    %v1671 = vrot.slane %v1670, 1
    %v1672 = vadd.f32 %v1670, %v1671
    %v1673 = vsel %vm211, %v1583, 0.0
    %v1674 = vsel %vm211, %v1584, 0.0
    %v1675 = vadd.f32 %v1673, %v1674
    %v1676 = vsel %vm211, %v1585, 0.0
    %v1677 = vadd.f32 %v1675, %v1676
    %v1678 = vsel %vm211, %v1586, 0.0
    %v1679 = vadd.f32 %v1677, %v1678
    %v1680 = vsel %vm211, %v1587, 0.0
    %v1681 = vadd.f32 %v1679, %v1680
    %v1682 = vsel %vm211, %v1588, 0.0
    %v1683 = vadd.f32 %v1681, %v1682
    %v1684 = vsel %vm211, %v1589, 0.0
    %v1685 = vadd.f32 %v1683, %v1684
    %v1686 = vsel %vm211, %v1590, 0.0
    %v1687 = vadd.f32 %v1685, %v1686
    %v1688 = vrot.slane %v1687, 4
    %v1689 = vadd.f32 %v1687, %v1688
    %v1690 = vrot.slane %v1689, 2
    %v1691 = vadd.f32 %v1689, %v1690
    %v1692 = vrot.slane %v1691, 1
    %v1693 = vadd.f32 %v1691, %v1692
    %v1694 = vsel %vm211, %v1591, 0.0
    %v1695 = vsel %vm211, %v1592, 0.0
    %v1696 = vadd.f32 %v1694, %v1695
    %v1697 = vsel %vm211, %v1593, 0.0
    %v1698 = vadd.f32 %v1696, %v1697
    %v1699 = vsel %vm211, %v1594, 0.0
    %v1700 = vadd.f32 %v1698, %v1699
    %v1701 = vsel %vm211, %v1595, 0.0
    %v1702 = vadd.f32 %v1700, %v1701
    %v1703 = vsel %vm211, %v1596, 0.0
    %v1704 = vadd.f32 %v1702, %v1703
    %v1705 = vsel %vm211, %v1597, 0.0
    %v1706 = vadd.f32 %v1704, %v1705
    %v1707 = vsel %vm211, %v1598, 0.0
    %v1708 = vadd.f32 %v1706, %v1707
    %v1709 = vrot.slane %v1708, 4
    %v1710 = vadd.f32 %v1708, %v1709
    %v1711 = vrot.slane %v1710, 2
    %v1712 = vadd.f32 %v1710, %v1711
    %v1713 = vrot.slane %v1712, 1
    %v1714 = vadd.f32 %v1712, %v1713
    %v1715 = vsel %vm211, %v1599, 0.0
    %v1716 = vsel %vm211, %v1600, 0.0
    %v1717 = vadd.f32 %v1715, %v1716
    %v1718 = vsel %vm211, %v1601, 0.0
    %v1719 = vadd.f32 %v1717, %v1718
    %v1720 = vsel %vm211, %v1602, 0.0
    %v1721 = vadd.f32 %v1719, %v1720
    %v1722 = vsel %vm211, %v1603, 0.0
    %v1723 = vadd.f32 %v1721, %v1722
    %v1724 = vsel %vm211, %v1604, 0.0
    %v1725 = vadd.f32 %v1723, %v1724
    %v1726 = vsel %vm211, %v1605, 0.0
    %v1727 = vadd.f32 %v1725, %v1726
    %v1728 = vsel %vm211, %v1606, 0.0
    %v1729 = vadd.f32 %v1727, %v1728
    %v1730 = vrot.slane %v1729, 4
    %v1731 = vadd.f32 %v1729, %v1730
    %v1732 = vrot.slane %v1731, 2
    %v1733 = vadd.f32 %v1731, %v1732
    %v1734 = vrot.slane %v1733, 1
    %v1735 = vadd.f32 %v1733, %v1734
    %v1736 = vsel %vm211, %v1607, 0.0
    %v1737 = vsel %vm211, %v1608, 0.0
    %v1738 = vadd.f32 %v1736, %v1737
    %v1739 = vsel %vm211, %v1609, 0.0
    %v1740 = vadd.f32 %v1738, %v1739
    %v1741 = vsel %vm211, %v1610, 0.0
    %v1742 = vadd.f32 %v1740, %v1741
    %v1743 = vsel %vm211, %v1611, 0.0
    %v1744 = vadd.f32 %v1742, %v1743
    %v1745 = vsel %vm211, %v1612, 0.0
    %v1746 = vadd.f32 %v1744, %v1745
    %v1747 = vsel %vm211, %v1613, 0.0
    %v1748 = vadd.f32 %v1746, %v1747
    %v1749 = vsel %vm211, %v1614, 0.0
    %v1750 = vadd.f32 %v1748, %v1749
    %v1751 = vrot.slane %v1750, 4
    %v1752 = vadd.f32 %v1750, %v1751
    %v1753 = vrot.slane %v1752, 2
    %v1754 = vadd.f32 %v1752, %v1753
    %v1755 = vrot.slane %v1754, 1
    %v1756 = vadd.f32 %v1754, %v1755
    %v1757 = vsel %vm211, %v1615, 0.0
    %v1758 = vsel %vm211, %v1616, 0.0
    %v1759 = vadd.f32 %v1757, %v1758
    %v1760 = vsel %vm211, %v1617, 0.0
    %v1761 = vadd.f32 %v1759, %v1760
    %v1762 = vsel %vm211, %v1618, 0.0
    %v1763 = vadd.f32 %v1761, %v1762
    %v1764 = vsel %vm211, %v1619, 0.0
    %v1765 = vadd.f32 %v1763, %v1764
    %v1766 = vsel %vm211, %v1620, 0.0
    %v1767 = vadd.f32 %v1765, %v1766
    %v1768 = vsel %vm211, %v1621, 0.0
    %v1769 = vadd.f32 %v1767, %v1768
    %v1770 = vsel %vm211, %v1622, 0.0
    %v1771 = vadd.f32 %v1769, %v1770
    %v1772 = vrot.slane %v1771, 4
    %v1773 = vadd.f32 %v1771, %v1772
    %v1774 = vrot.slane %v1773, 2
    %v1775 = vadd.f32 %v1773, %v1774
    %v1776 = vrot.slane %v1775, 1
    %v1777 = vadd.f32 %v1775, %v1776
    %v1778 = vsel %vm211, %v1623, 0.0
    %v1779 = vsel %vm211, %v1624, 0.0
    %v1780 = vadd.f32 %v1778, %v1779
    %v1781 = vsel %vm211, %v1625, 0.0
    %v1782 = vadd.f32 %v1780, %v1781
    %v1783 = vsel %vm211, %v1626, 0.0
    %v1784 = vadd.f32 %v1782, %v1783
    %v1785 = vsel %vm211, %v1627, 0.0
    %v1786 = vadd.f32 %v1784, %v1785
    %v1787 = vsel %vm211, %v1628, 0.0
    %v1788 = vadd.f32 %v1786, %v1787
    %v1789 = vsel %vm211, %v1629, 0.0
    %v1790 = vadd.f32 %v1788, %v1789
    %v1791 = vsel %vm211, %v1630, 0.0
    %v1792 = vadd.f32 %v1790, %v1791
    %v1793 = vrot.slane %v1792, 4
    %v1794 = vadd.f32 %v1792, %v1793
    %v1795 = vrot.slane %v1794, 2
    %v1796 = vadd.f32 %v1794, %v1795
    %v1797 = vrot.slane %v1796, 1
    %v1798 = vadd.f32 %v1796, %v1797
    %v1799 = vrcp.pop 64.0
    %v1800 = vmul.f32 64.0, %v1799
    %v1801 = vsub.f32 1.0, %v1800
    %v1802 = vmul.f32 %v1799, %v1801
    %v1803 = vadd.f32 %v1799, %v1802
    %vm1804 = vweird.f32 %v1799
    %v1805 = vsel %vm1804, %v1799, %v1803
    %v1806 = vmul.f32 %v1651, %v1805
    %v1807 = vmul.f32 %v1672, %v1805
    %v1808 = vmul.f32 %v1693, %v1805
    %v1809 = vmul.f32 %v1714, %v1805
    %v1810 = vmul.f32 %v1735, %v1805
    %v1811 = vmul.f32 %v1756, %v1805
    %v1812 = vmul.f32 %v1777, %v1805
    %v1813 = vmul.f32 %v1798, %v1805
    %v1814 = vld [vmem:[%s7] sm:$0xff]
    %v1815 = vld [vmem:[%s7 + $0x8] sm:$0xff]
    %v1816 = vld [vmem:[%s7 + $0x10] sm:$0xff]
    %v1817 = vld [vmem:[%s7 + $0x18] sm:$0xff]
    %v1818 = vld [vmem:[%s7 + $0x20] sm:$0xff]
    %v1819 = vld [vmem:[%s7 + $0x28] sm:$0xff]
    %v1820 = vld [vmem:[%s7 + $0x30] sm:$0xff]
    %v1821 = vld [vmem:[%s7 + $0x38] sm:$0xff]
    %v1822 = vld [vmem:[%s7 + $0x40] sm:$0xff]
    %v1823 = vld [vmem:[%s7 + $0x48] sm:$0xff]
    %v1824 = vld [vmem:[%s7 + $0x50] sm:$0xff]
    %v1825 = vld [vmem:[%s7 + $0x58] sm:$0xff]
    %v1826 = vld [vmem:[%s7 + $0x60] sm:$0xff]
    %v1827 = vld [vmem:[%s7 + $0x68] sm:$0xff]
    %v1828 = vld [vmem:[%s7 + $0x70] sm:$0xff]
    %v1829 = vld [vmem:[%s7 + $0x78] sm:$0xff]
    %v1830 = vld [vmem:[%s7 + $0x80] sm:$0xff]
    %v1831 = vld [vmem:[%s7 + $0x88] sm:$0xff]
    %v1832 = vld [vmem:[%s7 + $0x90] sm:$0xff]
    %v1833 = vld [vmem:[%s7 + $0x98] sm:$0xff]
    %v1834 = vld [vmem:[%s7 + $0xa0] sm:$0xff]
    %v1835 = vld [vmem:[%s7 + $0xa8] sm:$0xff]
    %v1836 = vld [vmem:[%s7 + $0xb0] sm:$0xff]
    %v1837 = vld [vmem:[%s7 + $0xb8] sm:$0xff]
    %v1838 = vld [vmem:[%s7 + $0xc0] sm:$0xff]
    %v1839 = vld [vmem:[%s7 + $0xc8] sm:$0xff]
    %v1840 = vld [vmem:[%s7 + $0xd0] sm:$0xff]
    %v1841 = vld [vmem:[%s7 + $0xd8] sm:$0xff]
    %v1842 = vld [vmem:[%s7 + $0xe0] sm:$0xff]
    %v1843 = vld [vmem:[%s7 + $0xe8] sm:$0xff]
    %v1844 = vld [vmem:[%s7 + $0xf0] sm:$0xff]
    %v1845 = vld [vmem:[%s7 + $0xf8] sm:$0xff]
    %v1846 = vld [vmem:[%s8] sm:$0xf]
    %v1848 = vperm.slane %v1846, 0
    %v1849 = vperm.slane %v1846, 1
    %v1850 = vperm.slane %v1846, 2
    %v1851 = vperm.slane %v1846, 3
    %vm1864 = vcmask 1041409
    %v1865 = vsel %vm1864, %v1807, %v1806
    %vm1866 = vcmask 1042434
    %v1867 = vsel %vm1866, %v1808, %v1865
    %vm1868 = vcmask 1043459
    %v1869 = vsel %vm1868, %v1809, %v1867
    %vm1870 = vcmask 1044484
    %v1871 = vsel %vm1870, %v1810, %v1869
    %vm1872 = vcmask 1045509
    %v1873 = vsel %vm1872, %v1811, %v1871
    %vm1874 = vcmask 1046534
    %v1875 = vsel %vm1874, %v1812, %v1873
    %vm1876 = vcmask 1047559
    %v1877 = vsel %vm1876, %v1813, %v1875
    %v1878 = vsel %vm211, %v1877, 0
    %1880 = vmatpush.msra.mxu0 0.0
    %1881 = vmatpush.msra.mxu0 0.0
    %1882 = vmatpush.msra.mxu0 0.0
    %1883 = vmatpush.msra.mxu0 0.0
    %1884 = vmatpush.msra.mxu0 0.0
    %1885 = vmatpush.msra.mxu0 0.0
    %1886 = vmatpush.msra.mxu0 0.0
    %1887 = vmatpush.msra.mxu0 0.0
    %1888 = vmatpush.msra.mxu0 %v1842
    %1889 = vmatpush.msra.mxu0 %v1838
    %1890 = vmatpush.msra.mxu0 %v1834
    %1891 = vmatpush.msra.mxu0 %v1830
    %1892 = vmatpush.msra.mxu0 %v1826
    %1893 = vmatpush.msra.mxu0 %v1822
    %1894 = vmatpush.msra.mxu0 %v1818
    %1895 = vmatpush.msra.mxu0 %v1814
    %1896 = vmatmul.f32.gmra.mxu0 %v1878
    %v1897 = vpop.f32.mrf.mxu0
    %v1898 = vadd.f32 %v1848, %v1897
    %1899 = vdwg.mxu0
    %1900 = vmatpush.msra.mxu0 0.0
    %1901 = vmatpush.msra.mxu0 0.0
    %1902 = vmatpush.msra.mxu0 0.0
    %1903 = vmatpush.msra.mxu0 0.0
    %1904 = vmatpush.msra.mxu0 0.0
    %1905 = vmatpush.msra.mxu0 0.0
    %1906 = vmatpush.msra.mxu0 0.0
    %1907 = vmatpush.msra.mxu0 0.0
    %1908 = vmatpush.msra.mxu0 %v1843
    %1909 = vmatpush.msra.mxu0 %v1839
    %1910 = vmatpush.msra.mxu0 %v1835
    %1911 = vmatpush.msra.mxu0 %v1831
    %1912 = vmatpush.msra.mxu0 %v1827
    %1913 = vmatpush.msra.mxu0 %v1823
    %1914 = vmatpush.msra.mxu0 %v1819
    %1915 = vmatpush.msra.mxu0 %v1815
    %1916 = vmatmul.f32.gmra.mxu0 %v1878
    %v1917 = vpop.f32.mrf.mxu0
    %v1918 = vadd.f32 %v1849, %v1917
    %1919 = vdwg.mxu0
    %1920 = vmatpush.msra.mxu0 0.0
    %1921 = vmatpush.msra.mxu0 0.0
    %1922 = vmatpush.msra.mxu0 0.0
    %1923 = vmatpush.msra.mxu0 0.0
    %1924 = vmatpush.msra.mxu0 0.0
    %1925 = vmatpush.msra.mxu0 0.0
    %1926 = vmatpush.msra.mxu0 0.0
    %1927 = vmatpush.msra.mxu0 0.0
    %1928 = vmatpush.msra.mxu0 %v1844
    %1929 = vmatpush.msra.mxu0 %v1840
    %1930 = vmatpush.msra.mxu0 %v1836
    %1931 = vmatpush.msra.mxu0 %v1832
    %1932 = vmatpush.msra.mxu0 %v1828
    %1933 = vmatpush.msra.mxu0 %v1824
    %1934 = vmatpush.msra.mxu0 %v1820
    %1935 = vmatpush.msra.mxu0 %v1816
    %1936 = vmatmul.f32.gmra.mxu0 %v1878
    %v1937 = vpop.f32.mrf.mxu0
    %v1938 = vadd.f32 %v1850, %v1937
    %1939 = vdwg.mxu0
    %1940 = vmatpush.msra.mxu0 0.0
    %1941 = vmatpush.msra.mxu0 0.0
    %1942 = vmatpush.msra.mxu0 0.0
    %1943 = vmatpush.msra.mxu0 0.0
    %1944 = vmatpush.msra.mxu0 0.0
    %1945 = vmatpush.msra.mxu0 0.0
    %1946 = vmatpush.msra.mxu0 0.0
    %1947 = vmatpush.msra.mxu0 0.0
    %1948 = vmatpush.msra.mxu0 %v1845
    %1949 = vmatpush.msra.mxu0 %v1841
    %1950 = vmatpush.msra.mxu0 %v1837
    %1951 = vmatpush.msra.mxu0 %v1833
    %1952 = vmatpush.msra.mxu0 %v1829
    %1953 = vmatpush.msra.mxu0 %v1825
    %1954 = vmatpush.msra.mxu0 %v1821
    %1955 = vmatpush.msra.mxu0 %v1817
    %1956 = vmatmul.f32.gmra.mxu0 %v1878
    %v1957 = vpop.f32.mrf.mxu0
    %v1958 = vadd.f32 %v1851, %v1957
    %1959 = vdwg.mxu0
    %v1960 = vmax.f32 %v1898, 0.0
    %v1961 = vmax.f32 %v1918, 0.0
    %v1962 = vmax.f32 %v1938, 0.0
    %v1963 = vmax.f32 %v1958, 0.0
    %v1964 = vld [vmem:[#allocation10] sm:$0xff]
    %v1965 = vld [vmem:[#allocation10 + $0x8] sm:$0xff]
    %v1966 = vld [vmem:[#allocation10 + $0x10] sm:$0xff]
    %v1967 = vld [vmem:[#allocation10 + $0x18] sm:$0xff]
    %v1968 = vld [vmem:[#allocation10 + $0x20] sm:$0xff]
    %v1969 = vld [vmem:[#allocation10 + $0x28] sm:$0xff]
    %v1970 = vld [vmem:[#allocation10 + $0x30] sm:$0xff]
    %v1971 = vld [vmem:[#allocation10 + $0x38] sm:$0xff]
    %v1972 = vld [vmem:[#allocation10 + $0x40] sm:$0xff]
    %v1973 = vld [vmem:[#allocation10 + $0x48] sm:$0xff]
    %v1974 = vld [vmem:[#allocation10 + $0x50] sm:$0xff]
    %v1975 = vld [vmem:[#allocation10 + $0x58] sm:$0xff]
    %v1976 = vld [vmem:[#allocation10 + $0x60] sm:$0xff]
    %v1977 = vld [vmem:[#allocation10 + $0x68] sm:$0xff]
    %v1978 = vld [vmem:[#allocation10 + $0x70] sm:$0xff]
    %v1979 = vld [vmem:[#allocation10 + $0x78] sm:$0xff]
    %v1980 = vld [vmem:[#allocation10 + $0x80] sm:$0xff]
    %v1981 = vld [vmem:[#allocation10 + $0x88] sm:$0xff]
    %v1982 = vld [vmem:[#allocation10 + $0x90] sm:$0xff]
    %v1983 = vld [vmem:[#allocation10 + $0x98] sm:$0xff]
    %v1984 = vld [vmem:[#allocation10 + $0xa0] sm:$0xff]
    %v1985 = vld [vmem:[#allocation10 + $0xa8] sm:$0xff]
    %v1986 = vld [vmem:[#allocation10 + $0xb0] sm:$0xff]
    %v1987 = vld [vmem:[#allocation10 + $0xb8] sm:$0xff]
    %v1988 = vld [vmem:[#allocation10 + $0xc0] sm:$0xff]
    %v1989 = vld [vmem:[#allocation10 + $0xc8] sm:$0xff]
    %v1990 = vld [vmem:[#allocation10 + $0xd0] sm:$0xff]
    %v1991 = vld [vmem:[#allocation10 + $0xd8] sm:$0xff]
    %v1992 = vld [vmem:[#allocation10 + $0xe0] sm:$0xff]
    %v1993 = vld [vmem:[#allocation10 + $0xe8] sm:$0xff]
    %v1994 = vld [vmem:[#allocation10 + $0xf0] sm:$0xff]
    %v1995 = vld [vmem:[#allocation10 + $0xf8] sm:$0xff]
    %v1996 = vld [vmem:[#allocation10 + $0x100] sm:$0xff]
    %v1997 = vld [vmem:[#allocation10 + $0x108] sm:$0xff]
    %v1998 = vld [vmem:[#allocation10 + $0x110] sm:$0xff]
    %v1999 = vld [vmem:[#allocation10 + $0x118] sm:$0xff]
    %v2000 = vld [vmem:[#allocation10 + $0x120] sm:$0xff]
    %v2001 = vld [vmem:[#allocation10 + $0x128] sm:$0xff]
    %v2002 = vld [vmem:[#allocation10 + $0x130] sm:$0xff]
    %v2003 = vld [vmem:[#allocation10 + $0x138] sm:$0xff]
    %v2004 = vld [vmem:[#allocation10 + $0x140] sm:$0xff]
    %v2005 = vld [vmem:[#allocation10 + $0x148] sm:$0xff]
    %v2006 = vld [vmem:[#allocation10 + $0x150] sm:$0xff]
    %v2007 = vld [vmem:[#allocation10 + $0x158] sm:$0xff]
    %v2008 = vld [vmem:[#allocation10 + $0x160] sm:$0xff]
    %v2009 = vld [vmem:[#allocation10 + $0x168] sm:$0xff]
    %v2010 = vld [vmem:[#allocation10 + $0x170] sm:$0xff]
    %v2011 = vld [vmem:[#allocation10 + $0x178] sm:$0xff]
    %v2012 = vld [vmem:[#allocation10 + $0x180] sm:$0xff]
    %v2013 = vld [vmem:[#allocation10 + $0x188] sm:$0xff]
    %v2014 = vld [vmem:[#allocation10 + $0x190] sm:$0xff]
    %v2015 = vld [vmem:[#allocation10 + $0x198] sm:$0xff]
    %v2016 = vld [vmem:[#allocation10 + $0x1a0] sm:$0xff]
    %v2017 = vld [vmem:[#allocation10 + $0x1a8] sm:$0xff]
    %v2018 = vld [vmem:[#allocation10 + $0x1b0] sm:$0xff]
    %v2019 = vld [vmem:[#allocation10 + $0x1b8] sm:$0xff]
    %v2020 = vld [vmem:[#allocation10 + $0x1c0] sm:$0xff]
    %v2021 = vld [vmem:[#allocation10 + $0x1c8] sm:$0xff]
    %v2022 = vld [vmem:[#allocation10 + $0x1d0] sm:$0xff]
    %v2023 = vld [vmem:[#allocation10 + $0x1d8] sm:$0xff]
    %v2024 = vld [vmem:[#allocation10 + $0x1e0] sm:$0xff]
    %v2025 = vld [vmem:[#allocation10 + $0x1e8] sm:$0xff]
    %v2026 = vld [vmem:[#allocation10 + $0x1f0] sm:$0xff]
    %v2027 = vld [vmem:[#allocation10 + $0x1f8] sm:$0xff]
    %v2028 = vld [vmem:[#allocation10 + $0x200] sm:$0xff]
    %v2029 = vld [vmem:[#allocation10 + $0x208] sm:$0xff]
    %v2030 = vld [vmem:[#allocation10 + $0x210] sm:$0xff]
    %v2031 = vld [vmem:[#allocation10 + $0x218] sm:$0xff]
    %v2032 = vld [vmem:[#allocation10 + $0x220] sm:$0xff]
    %v2033 = vld [vmem:[#allocation10 + $0x228] sm:$0xff]
    %v2034 = vld [vmem:[#allocation10 + $0x230] sm:$0xff]
    %v2035 = vld [vmem:[#allocation10 + $0x238] sm:$0xff]
    %v2036 = vld [vmem:[#allocation10 + $0x240] sm:$0xff]
    %v2037 = vld [vmem:[#allocation10 + $0x248] sm:$0xff]
    %v2038 = vld [vmem:[#allocation10 + $0x250] sm:$0xff]
    %v2039 = vld [vmem:[#allocation10 + $0x258] sm:$0xff]
    %v2040 = vld [vmem:[#allocation10 + $0x260] sm:$0xff]
    %v2041 = vld [vmem:[#allocation10 + $0x268] sm:$0xff]
    %v2042 = vld [vmem:[#allocation10 + $0x270] sm:$0xff]
    %v2043 = vld [vmem:[#allocation10 + $0x278] sm:$0xff]
    %v2044 = vld [vmem:[#allocation10 + $0x280] sm:$0xff]
    %v2045 = vld [vmem:[#allocation10 + $0x288] sm:$0xff]
    %v2046 = vld [vmem:[#allocation10 + $0x290] sm:$0xff]
    %v2047 = vld [vmem:[#allocation10 + $0x298] sm:$0xff]
    %v2048 = vld [vmem:[#allocation10 + $0x2a0] sm:$0xff]
    %v2049 = vld [vmem:[#allocation10 + $0x2a8] sm:$0xff]
    %v2050 = vld [vmem:[#allocation10 + $0x2b0] sm:$0xff]
    %v2051 = vld [vmem:[#allocation10 + $0x2b8] sm:$0xff]
    %v2052 = vld [vmem:[#allocation10 + $0x2c0] sm:$0xff]
    %v2053 = vld [vmem:[#allocation10 + $0x2c8] sm:$0xff]
    %v2054 = vld [vmem:[#allocation10 + $0x2d0] sm:$0xff]
    %v2055 = vld [vmem:[#allocation10 + $0x2d8] sm:$0xff]
    %v2056 = vld [vmem:[#allocation10 + $0x2e0] sm:$0xff]
    %v2057 = vld [vmem:[#allocation10 + $0x2e8] sm:$0xff]
    %v2058 = vld [vmem:[#allocation10 + $0x2f0] sm:$0xff]
    %v2059 = vld [vmem:[#allocation10 + $0x2f8] sm:$0xff]
    %v2060 = vld [vmem:[#allocation10 + $0x300] sm:$0xff]
    %v2061 = vld [vmem:[#allocation10 + $0x308] sm:$0xff]
    %v2062 = vld [vmem:[#allocation10 + $0x310] sm:$0xff]
    %v2063 = vld [vmem:[#allocation10 + $0x318] sm:$0xff]
    %v2064 = vld [vmem:[#allocation10 + $0x320] sm:$0xff]
    %v2065 = vld [vmem:[#allocation10 + $0x328] sm:$0xff]
    %v2066 = vld [vmem:[#allocation10 + $0x330] sm:$0xff]
    %v2067 = vld [vmem:[#allocation10 + $0x338] sm:$0xff]
    %v2068 = vld [vmem:[#allocation10 + $0x340] sm:$0xff]
    %v2069 = vld [vmem:[#allocation10 + $0x348] sm:$0xff]
    %v2070 = vld [vmem:[#allocation10 + $0x350] sm:$0xff]
    %v2071 = vld [vmem:[#allocation10 + $0x358] sm:$0xff]
    %v2072 = vld [vmem:[#allocation10 + $0x360] sm:$0xff]
    %v2073 = vld [vmem:[#allocation10 + $0x368] sm:$0xff]
    %v2074 = vld [vmem:[#allocation10 + $0x370] sm:$0xff]
    %v2075 = vld [vmem:[#allocation10 + $0x378] sm:$0xff]
    %v2076 = vld [vmem:[#allocation10 + $0x380] sm:$0xff]
    %v2077 = vld [vmem:[#allocation10 + $0x388] sm:$0xff]
    %v2078 = vld [vmem:[#allocation10 + $0x390] sm:$0xff]
    %v2079 = vld [vmem:[#allocation10 + $0x398] sm:$0xff]
    %v2080 = vld [vmem:[#allocation10 + $0x3a0] sm:$0xff]
    %v2081 = vld [vmem:[#allocation10 + $0x3a8] sm:$0xff]
    %v2082 = vld [vmem:[#allocation10 + $0x3b0] sm:$0xff]
    %v2083 = vld [vmem:[#allocation10 + $0x3b8] sm:$0xff]
    %v2084 = vld [vmem:[#allocation10 + $0x3c0] sm:$0xff]
    %v2085 = vld [vmem:[#allocation10 + $0x3c8] sm:$0xff]
    %v2086 = vld [vmem:[#allocation10 + $0x3d0] sm:$0xff]
    %v2087 = vld [vmem:[#allocation10 + $0x3d8] sm:$0xff]
    %v2088 = vld [vmem:[#allocation10 + $0x3e0] sm:$0xff]
    %v2089 = vld [vmem:[#allocation10 + $0x3e8] sm:$0xff]
    %v2090 = vld [vmem:[#allocation10 + $0x3f0] sm:$0xff]
    %v2091 = vld [vmem:[#allocation10 + $0x3f8] sm:$0xff]
    %v2092 = vld [vmem:[#allocation10 + $0x400] sm:$0xff]
    %v2093 = vld [vmem:[#allocation10 + $0x408] sm:$0xff]
    %v2094 = vld [vmem:[#allocation10 + $0x410] sm:$0xff]
    %v2095 = vld [vmem:[#allocation10 + $0x418] sm:$0xff]
    %v2096 = vld [vmem:[#allocation10 + $0x420] sm:$0xff]
    %v2097 = vld [vmem:[#allocation10 + $0x428] sm:$0xff]
    %v2098 = vld [vmem:[#allocation10 + $0x430] sm:$0xff]
    %v2099 = vld [vmem:[#allocation10 + $0x438] sm:$0xff]
    %v2100 = vld [vmem:[#allocation10 + $0x440] sm:$0xff]
    %v2101 = vld [vmem:[#allocation10 + $0x448] sm:$0xff]
    %v2102 = vld [vmem:[#allocation10 + $0x450] sm:$0xff]
    %v2103 = vld [vmem:[#allocation10 + $0x458] sm:$0xff]
    %v2104 = vld [vmem:[#allocation10 + $0x460] sm:$0xff]
    %v2105 = vld [vmem:[#allocation10 + $0x468] sm:$0xff]
    %v2106 = vld [vmem:[#allocation10 + $0x470] sm:$0xff]
    %v2107 = vld [vmem:[#allocation10 + $0x478] sm:$0xff]
    %v2108 = vld [vmem:[#allocation10 + $0x480] sm:$0xff]
    %v2109 = vld [vmem:[#allocation10 + $0x488] sm:$0xff]
    %v2110 = vld [vmem:[#allocation10 + $0x490] sm:$0xff]
    %v2111 = vld [vmem:[#allocation10 + $0x498] sm:$0xff]
    %v2112 = vld [vmem:[#allocation10 + $0x4a0] sm:$0xff]
    %v2113 = vld [vmem:[#allocation10 + $0x4a8] sm:$0xff]
    %v2114 = vld [vmem:[#allocation10 + $0x4b0] sm:$0xff]
    %v2115 = vld [vmem:[#allocation10 + $0x4b8] sm:$0xff]
    %v2116 = vld [vmem:[#allocation10 + $0x4c0] sm:$0xff]
    %v2117 = vld [vmem:[#allocation10 + $0x4c8] sm:$0xff]
    %v2118 = vld [vmem:[#allocation10 + $0x4d0] sm:$0xff]
    %v2119 = vld [vmem:[#allocation10 + $0x4d8] sm:$0xff]
    %v2120 = vld [vmem:[#allocation10 + $0x4e0] sm:$0xff]
    %v2121 = vld [vmem:[#allocation10 + $0x4e8] sm:$0xff]
    %v2122 = vld [vmem:[#allocation10 + $0x4f0] sm:$0xff]
    %v2123 = vld [vmem:[#allocation10 + $0x4f8] sm:$0xff]
    %v2124 = vld [vmem:[#allocation10 + $0x500] sm:$0xff]
    %v2125 = vld [vmem:[#allocation10 + $0x508] sm:$0xff]
    %v2126 = vld [vmem:[#allocation10 + $0x510] sm:$0xff]
    %v2127 = vld [vmem:[#allocation10 + $0x518] sm:$0xff]
    %v2128 = vld [vmem:[#allocation10 + $0x520] sm:$0xff]
    %v2129 = vld [vmem:[#allocation10 + $0x528] sm:$0xff]
    %v2130 = vld [vmem:[#allocation10 + $0x530] sm:$0xff]
    %v2131 = vld [vmem:[#allocation10 + $0x538] sm:$0xff]
    %v2132 = vld [vmem:[#allocation10 + $0x540] sm:$0xff]
    %v2133 = vld [vmem:[#allocation10 + $0x548] sm:$0xff]
    %v2134 = vld [vmem:[#allocation10 + $0x550] sm:$0xff]
    %v2135 = vld [vmem:[#allocation10 + $0x558] sm:$0xff]
    %v2136 = vld [vmem:[#allocation10 + $0x560] sm:$0xff]
    %v2137 = vld [vmem:[#allocation10 + $0x568] sm:$0xff]
    %v2138 = vld [vmem:[#allocation10 + $0x570] sm:$0xff]
    %v2139 = vld [vmem:[#allocation10 + $0x578] sm:$0xff]
    %v2140 = vld [vmem:[#allocation10 + $0x580] sm:$0xff]
    %v2141 = vld [vmem:[#allocation10 + $0x588] sm:$0xff]
    %v2142 = vld [vmem:[#allocation10 + $0x590] sm:$0xff]
    %v2143 = vld [vmem:[#allocation10 + $0x598] sm:$0xff]
    %v2144 = vld [vmem:[#allocation10 + $0x5a0] sm:$0xff]
    %v2145 = vld [vmem:[#allocation10 + $0x5a8] sm:$0xff]
    %v2146 = vld [vmem:[#allocation10 + $0x5b0] sm:$0xff]
    %v2147 = vld [vmem:[#allocation10 + $0x5b8] sm:$0xff]
    %v2148 = vld [vmem:[#allocation10 + $0x5c0] sm:$0xff]
    %v2149 = vld [vmem:[#allocation10 + $0x5c8] sm:$0xff]
    %v2150 = vld [vmem:[#allocation10 + $0x5d0] sm:$0xff]
    %v2151 = vld [vmem:[#allocation10 + $0x5d8] sm:$0xff]
    %v2152 = vld [vmem:[#allocation10 + $0x5e0] sm:$0xff]
    %v2153 = vld [vmem:[#allocation10 + $0x5e8] sm:$0xff]
    %v2154 = vld [vmem:[#allocation10 + $0x5f0] sm:$0xff]
    %v2155 = vld [vmem:[#allocation10 + $0x5f8] sm:$0xff]
    %v2156 = vld [vmem:[#allocation10 + $0x600] sm:$0xff]
    %v2157 = vld [vmem:[#allocation10 + $0x608] sm:$0xff]
    %v2158 = vld [vmem:[#allocation10 + $0x610] sm:$0xff]
    %v2159 = vld [vmem:[#allocation10 + $0x618] sm:$0xff]
    %v2160 = vld [vmem:[#allocation10 + $0x620] sm:$0xff]
    %v2161 = vld [vmem:[#allocation10 + $0x628] sm:$0xff]
    %v2162 = vld [vmem:[#allocation10 + $0x630] sm:$0xff]
    %v2163 = vld [vmem:[#allocation10 + $0x638] sm:$0xff]
    %v2164 = vld [vmem:[#allocation10 + $0x640] sm:$0xff]
    %v2165 = vld [vmem:[#allocation10 + $0x648] sm:$0xff]
    %v2166 = vld [vmem:[#allocation10 + $0x650] sm:$0xff]
    %v2167 = vld [vmem:[#allocation10 + $0x658] sm:$0xff]
    %v2168 = vld [vmem:[#allocation10 + $0x660] sm:$0xff]
    %v2169 = vld [vmem:[#allocation10 + $0x668] sm:$0xff]
    %v2170 = vld [vmem:[#allocation10 + $0x670] sm:$0xff]
    %v2171 = vld [vmem:[#allocation10 + $0x678] sm:$0xff]
    %v2172 = vld [vmem:[#allocation10 + $0x680] sm:$0xff]
    %v2173 = vld [vmem:[#allocation10 + $0x688] sm:$0xff]
    %v2174 = vld [vmem:[#allocation10 + $0x690] sm:$0xff]
    %v2175 = vld [vmem:[#allocation10 + $0x698] sm:$0xff]
    %v2176 = vld [vmem:[#allocation10 + $0x6a0] sm:$0xff]
    %v2177 = vld [vmem:[#allocation10 + $0x6a8] sm:$0xff]
    %v2178 = vld [vmem:[#allocation10 + $0x6b0] sm:$0xff]
    %v2179 = vld [vmem:[#allocation10 + $0x6b8] sm:$0xff]
    %v2180 = vld [vmem:[#allocation10 + $0x6c0] sm:$0xff]
    %v2181 = vld [vmem:[#allocation10 + $0x6c8] sm:$0xff]
    %v2182 = vld [vmem:[#allocation10 + $0x6d0] sm:$0xff]
    %v2183 = vld [vmem:[#allocation10 + $0x6d8] sm:$0xff]
    %v2184 = vld [vmem:[#allocation10 + $0x6e0] sm:$0xff]
    %v2185 = vld [vmem:[#allocation10 + $0x6e8] sm:$0xff]
    %v2186 = vld [vmem:[#allocation10 + $0x6f0] sm:$0xff]
    %v2187 = vld [vmem:[#allocation10 + $0x6f8] sm:$0xff]
    %v2188 = vld [vmem:[#allocation10 + $0x700] sm:$0xff]
    %v2189 = vld [vmem:[#allocation10 + $0x708] sm:$0xff]
    %v2190 = vld [vmem:[#allocation10 + $0x710] sm:$0xff]
    %v2191 = vld [vmem:[#allocation10 + $0x718] sm:$0xff]
    %v2192 = vld [vmem:[#allocation10 + $0x720] sm:$0xff]
    %v2193 = vld [vmem:[#allocation10 + $0x728] sm:$0xff]
    %v2194 = vld [vmem:[#allocation10 + $0x730] sm:$0xff]
    %v2195 = vld [vmem:[#allocation10 + $0x738] sm:$0xff]
    %v2196 = vld [vmem:[#allocation10 + $0x740] sm:$0xff]
    %v2197 = vld [vmem:[#allocation10 + $0x748] sm:$0xff]
    %v2198 = vld [vmem:[#allocation10 + $0x750] sm:$0xff]
    %v2199 = vld [vmem:[#allocation10 + $0x758] sm:$0xff]
    %v2200 = vld [vmem:[#allocation10 + $0x760] sm:$0xff]
    %v2201 = vld [vmem:[#allocation10 + $0x768] sm:$0xff]
    %v2202 = vld [vmem:[#allocation10 + $0x770] sm:$0xff]
    %v2203 = vld [vmem:[#allocation10 + $0x778] sm:$0xff]
    %v2204 = vld [vmem:[#allocation10 + $0x780] sm:$0xff]
    %v2205 = vld [vmem:[#allocation10 + $0x788] sm:$0xff]
    %v2206 = vld [vmem:[#allocation10 + $0x790] sm:$0xff]
    %v2207 = vld [vmem:[#allocation10 + $0x798] sm:$0xff]
    %v2208 = vld [vmem:[#allocation10 + $0x7a0] sm:$0xff]
    %v2209 = vld [vmem:[#allocation10 + $0x7a8] sm:$0xff]
    %v2210 = vld [vmem:[#allocation10 + $0x7b0] sm:$0xff]
    %v2211 = vld [vmem:[#allocation10 + $0x7b8] sm:$0xff]
    %v2212 = vld [vmem:[#allocation10 + $0x7c0] sm:$0xff]
    %v2213 = vld [vmem:[#allocation10 + $0x7c8] sm:$0xff]
    %v2214 = vld [vmem:[#allocation10 + $0x7d0] sm:$0xff]
    %v2215 = vld [vmem:[#allocation10 + $0x7d8] sm:$0xff]
    %v2216 = vld [vmem:[#allocation10 + $0x7e0] sm:$0xff]
    %v2217 = vld [vmem:[#allocation10 + $0x7e8] sm:$0xff]
    %v2218 = vld [vmem:[#allocation10 + $0x7f0] sm:$0xff]
    %v2219 = vld [vmem:[#allocation10 + $0x7f8] sm:$0xff]
    %v2220 = vld [vmem:[%s10] sm:$0xf]
    %v2222 = vperm.slane %v2220, 0
    %v2223 = vperm.slane %v2220, 1
    %v2224 = vperm.slane %v2220, 2
    %v2225 = vperm.slane %v2220, 3
    %2230 = vmatpush.msra.mxu0 %v2024
    %2231 = vmatpush.msra.mxu0 %v2020
    %2232 = vmatpush.msra.mxu0 %v2016
    %2233 = vmatpush.msra.mxu0 %v2012
    %2234 = vmatpush.msra.mxu0 %v2008
    %2235 = vmatpush.msra.mxu0 %v2004
    %2236 = vmatpush.msra.mxu0 %v2000
    %2237 = vmatpush.msra.mxu0 %v1996
    %2238 = vmatpush.msra.mxu0 %v1992
    %2239 = vmatpush.msra.mxu0 %v1988
    %2240 = vmatpush.msra.mxu0 %v1984
    %2241 = vmatpush.msra.mxu0 %v1980
    %2242 = vmatpush.msra.mxu0 %v1976
    %2243 = vmatpush.msra.mxu0 %v1972
    %2244 = vmatpush.msra.mxu0 %v1968
    %2245 = vmatpush.msra.mxu0 %v1964
    %2246 = vmatmul.f32.gmra.mxu0 %v1960
    %v2247 = vpop.f32.mrf.mxu0
    %v2248 = vadd.f32 %v2222, %v2247
    %2249 = vdwg.mxu0
    %2250 = vmatpush.msra.mxu0 %v2088
    %2251 = vmatpush.msra.mxu0 %v2084
    %2252 = vmatpush.msra.mxu0 %v2080
    %2253 = vmatpush.msra.mxu0 %v2076
    %2254 = vmatpush.msra.mxu0 %v2072
    %2255 = vmatpush.msra.mxu0 %v2068
    %2256 = vmatpush.msra.mxu0 %v2064
    %2257 = vmatpush.msra.mxu0 %v2060
    %2258 = vmatpush.msra.mxu0 %v2056
    %2259 = vmatpush.msra.mxu0 %v2052
    %2260 = vmatpush.msra.mxu0 %v2048
    %2261 = vmatpush.msra.mxu0 %v2044
    %2262 = vmatpush.msra.mxu0 %v2040
    %2263 = vmatpush.msra.mxu0 %v2036
    %2264 = vmatpush.msra.mxu0 %v2032
    %2265 = vmatpush.msra.mxu0 %v2028
    %2266 = vmatmul.f32.gmra.mxu0 %v1961
    %v2267 = vpop.f32.mrf.mxu0
    %v2268 = vadd.f32 %v2248, %v2267
    %2269 = vdwg.mxu0
    %2270 = vmatpush.msra.mxu0 %v2152
    %2271 = vmatpush.msra.mxu0 %v2148
    %2272 = vmatpush.msra.mxu0 %v2144
    %2273 = vmatpush.msra.mxu0 %v2140
    %2274 = vmatpush.msra.mxu0 %v2136
    %2275 = vmatpush.msra.mxu0 %v2132
    %2276 = vmatpush.msra.mxu0 %v2128
    %2277 = vmatpush.msra.mxu0 %v2124
    %2278 = vmatpush.msra.mxu0 %v2120
    %2279 = vmatpush.msra.mxu0 %v2116
    %2280 = vmatpush.msra.mxu0 %v2112
    %2281 = vmatpush.msra.mxu0 %v2108
    %2282 = vmatpush.msra.mxu0 %v2104
    %2283 = vmatpush.msra.mxu0 %v2100
    %2284 = vmatpush.msra.mxu0 %v2096
    %2285 = vmatpush.msra.mxu0 %v2092
    %2286 = vmatmul.f32.gmra.mxu0 %v1962
    %v2287 = vpop.f32.mrf.mxu0
    %v2288 = vadd.f32 %v2268, %v2287
    %2289 = vdwg.mxu0
    %2290 = vmatpush.msra.mxu0 %v2216
    %2291 = vmatpush.msra.mxu0 %v2212
    %2292 = vmatpush.msra.mxu0 %v2208
    %2293 = vmatpush.msra.mxu0 %v2204
    %2294 = vmatpush.msra.mxu0 %v2200
    %2295 = vmatpush.msra.mxu0 %v2196
    %2296 = vmatpush.msra.mxu0 %v2192
    %2297 = vmatpush.msra.mxu0 %v2188
    %2298 = vmatpush.msra.mxu0 %v2184
    %2299 = vmatpush.msra.mxu0 %v2180
    %2300 = vmatpush.msra.mxu0 %v2176
    %2301 = vmatpush.msra.mxu0 %v2172
    %2302 = vmatpush.msra.mxu0 %v2168
    %2303 = vmatpush.msra.mxu0 %v2164
    %2304 = vmatpush.msra.mxu0 %v2160
    %2305 = vmatpush.msra.mxu0 %v2156
    %2306 = vmatmul.f32.gmra.mxu0 %v1963
    %v2307 = vpop.f32.mrf.mxu0
    %v2308 = vadd.f32 %v2288, %v2307
    %2309 = vdwg.mxu0
    %2310 = vmatpush.msra.mxu0 %v2025
    %2311 = vmatpush.msra.mxu0 %v2021
    %2312 = vmatpush.msra.mxu0 %v2017
    %2313 = vmatpush.msra.mxu0 %v2013
    %2314 = vmatpush.msra.mxu0 %v2009
    %2315 = vmatpush.msra.mxu0 %v2005
    %2316 = vmatpush.msra.mxu0 %v2001
    %2317 = vmatpush.msra.mxu0 %v1997
    %2318 = vmatpush.msra.mxu0 %v1993
    %2319 = vmatpush.msra.mxu0 %v1989
    %2320 = vmatpush.msra.mxu0 %v1985
    %2321 = vmatpush.msra.mxu0 %v1981
    %2322 = vmatpush.msra.mxu0 %v1977
    %2323 = vmatpush.msra.mxu0 %v1973
    %2324 = vmatpush.msra.mxu0 %v1969
    %2325 = vmatpush.msra.mxu0 %v1965
    %2326 = vmatmul.f32.gmra.mxu0 %v1960
    %v2327 = vpop.f32.mrf.mxu0
    %v2328 = vadd.f32 %v2223, %v2327
    %2329 = vdwg.mxu0
    %2330 = vmatpush.msra.mxu0 %v2089
    %2331 = vmatpush.msra.mxu0 %v2085
    %2332 = vmatpush.msra.mxu0 %v2081
    %2333 = vmatpush.msra.mxu0 %v2077
    %2334 = vmatpush.msra.mxu0 %v2073
    %2335 = vmatpush.msra.mxu0 %v2069
    %2336 = vmatpush.msra.mxu0 %v2065
    %2337 = vmatpush.msra.mxu0 %v2061
    %2338 = vmatpush.msra.mxu0 %v2057
    %2339 = vmatpush.msra.mxu0 %v2053
    %2340 = vmatpush.msra.mxu0 %v2049
    %2341 = vmatpush.msra.mxu0 %v2045
    %2342 = vmatpush.msra.mxu0 %v2041
    %2343 = vmatpush.msra.mxu0 %v2037
    %2344 = vmatpush.msra.mxu0 %v2033
    %2345 = vmatpush.msra.mxu0 %v2029
    %2346 = vmatmul.f32.gmra.mxu0 %v1961
    %v2347 = vpop.f32.mrf.mxu0
    %v2348 = vadd.f32 %v2328, %v2347
    %2349 = vdwg.mxu0
    %2350 = vmatpush.msra.mxu0 %v2153
    %2351 = vmatpush.msra.mxu0 %v2149
    %2352 = vmatpush.msra.mxu0 %v2145
    %2353 = vmatpush.msra.mxu0 %v2141
    %2354 = vmatpush.msra.mxu0 %v2137
    %2355 = vmatpush.msra.mxu0 %v2133
    %2356 = vmatpush.msra.mxu0 %v2129
    %2357 = vmatpush.msra.mxu0 %v2125
    %2358 = vmatpush.msra.mxu0 %v2121
    %2359 = vmatpush.msra.mxu0 %v2117
    %2360 = vmatpush.msra.mxu0 %v2113
    %2361 = vmatpush.msra.mxu0 %v2109
    %2362 = vmatpush.msra.mxu0 %v2105
    %2363 = vmatpush.msra.mxu0 %v2101
    %2364 = vmatpush.msra.mxu0 %v2097
    %2365 = vmatpush.msra.mxu0 %v2093
    %2366 = vmatmul.f32.gmra.mxu0 %v1962
    %v2367 = vpop.f32.mrf.mxu0
    %v2368 = vadd.f32 %v2348, %v2367
    %2369 = vdwg.mxu0
    %2370 = vmatpush.msra.mxu0 %v2217
    %2371 = vmatpush.msra.mxu0 %v2213
    %2372 = vmatpush.msra.mxu0 %v2209
    %2373 = vmatpush.msra.mxu0 %v2205
    %2374 = vmatpush.msra.mxu0 %v2201
    %2375 = vmatpush.msra.mxu0 %v2197
    %2376 = vmatpush.msra.mxu0 %v2193
    %2377 = vmatpush.msra.mxu0 %v2189
    %2378 = vmatpush.msra.mxu0 %v2185
    %2379 = vmatpush.msra.mxu0 %v2181
    %2380 = vmatpush.msra.mxu0 %v2177
    %2381 = vmatpush.msra.mxu0 %v2173
    %2382 = vmatpush.msra.mxu0 %v2169
    %2383 = vmatpush.msra.mxu0 %v2165
    %2384 = vmatpush.msra.mxu0 %v2161
    %2385 = vmatpush.msra.mxu0 %v2157
    %2386 = vmatmul.f32.gmra.mxu0 %v1963
    %v2387 = vpop.f32.mrf.mxu0
    %v2388 = vadd.f32 %v2368, %v2387
    %2389 = vdwg.mxu0
    %2390 = vmatpush.msra.mxu0 %v2026
    %2391 = vmatpush.msra.mxu0 %v2022
    %2392 = vmatpush.msra.mxu0 %v2018
    %2393 = vmatpush.msra.mxu0 %v2014
    %2394 = vmatpush.msra.mxu0 %v2010
    %2395 = vmatpush.msra.mxu0 %v2006
    %2396 = vmatpush.msra.mxu0 %v2002
    %2397 = vmatpush.msra.mxu0 %v1998
    %2398 = vmatpush.msra.mxu0 %v1994
    %2399 = vmatpush.msra.mxu0 %v1990
    %2400 = vmatpush.msra.mxu0 %v1986
    %2401 = vmatpush.msra.mxu0 %v1982
    %2402 = vmatpush.msra.mxu0 %v1978
    %2403 = vmatpush.msra.mxu0 %v1974
    %2404 = vmatpush.msra.mxu0 %v1970
    %2405 = vmatpush.msra.mxu0 %v1966
    %2406 = vmatmul.f32.gmra.mxu0 %v1960
    %v2407 = vpop.f32.mrf.mxu0
    %v2408 = vadd.f32 %v2224, %v2407
    %2409 = vdwg.mxu0
    %2410 = vmatpush.msra.mxu0 %v2090
    %2411 = vmatpush.msra.mxu0 %v2086
    %2412 = vmatpush.msra.mxu0 %v2082
    %2413 = vmatpush.msra.mxu0 %v2078
    %2414 = vmatpush.msra.mxu0 %v2074
    %2415 = vmatpush.msra.mxu0 %v2070
    %2416 = vmatpush.msra.mxu0 %v2066
    %2417 = vmatpush.msra.mxu0 %v2062
    %2418 = vmatpush.msra.mxu0 %v2058
    %2419 = vmatpush.msra.mxu0 %v2054
    %2420 = vmatpush.msra.mxu0 %v2050
    %2421 = vmatpush.msra.mxu0 %v2046
    %2422 = vmatpush.msra.mxu0 %v2042
    %2423 = vmatpush.msra.mxu0 %v2038
    %2424 = vmatpush.msra.mxu0 %v2034
    %2425 = vmatpush.msra.mxu0 %v2030
    %2426 = vmatmul.f32.gmra.mxu0 %v1961
    %v2427 = vpop.f32.mrf.mxu0
    %v2428 = vadd.f32 %v2408, %v2427
    %2429 = vdwg.mxu0
    %2430 = vmatpush.msra.mxu0 %v2154
    %2431 = vmatpush.msra.mxu0 %v2150
    %2432 = vmatpush.msra.mxu0 %v2146
    %2433 = vmatpush.msra.mxu0 %v2142
    %2434 = vmatpush.msra.mxu0 %v2138
    %2435 = vmatpush.msra.mxu0 %v2134
    %2436 = vmatpush.msra.mxu0 %v2130
    %2437 = vmatpush.msra.mxu0 %v2126
    %2438 = vmatpush.msra.mxu0 %v2122
    %2439 = vmatpush.msra.mxu0 %v2118
    %2440 = vmatpush.msra.mxu0 %v2114
    %2441 = vmatpush.msra.mxu0 %v2110
    %2442 = vmatpush.msra.mxu0 %v2106
    %2443 = vmatpush.msra.mxu0 %v2102
    %2444 = vmatpush.msra.mxu0 %v2098
    %2445 = vmatpush.msra.mxu0 %v2094
    %2446 = vmatmul.f32.gmra.mxu0 %v1962
    %v2447 = vpop.f32.mrf.mxu0
    %v2448 = vadd.f32 %v2428, %v2447
    %2449 = vdwg.mxu0
    %2450 = vmatpush.msra.mxu0 %v2218
    %2451 = vmatpush.msra.mxu0 %v2214
    %2452 = vmatpush.msra.mxu0 %v2210
    %2453 = vmatpush.msra.mxu0 %v2206
    %2454 = vmatpush.msra.mxu0 %v2202
    %2455 = vmatpush.msra.mxu0 %v2198
    %2456 = vmatpush.msra.mxu0 %v2194
    %2457 = vmatpush.msra.mxu0 %v2190
    %2458 = vmatpush.msra.mxu0 %v2186
    %2459 = vmatpush.msra.mxu0 %v2182
    %2460 = vmatpush.msra.mxu0 %v2178
    %2461 = vmatpush.msra.mxu0 %v2174
    %2462 = vmatpush.msra.mxu0 %v2170
    %2463 = vmatpush.msra.mxu0 %v2166
    %2464 = vmatpush.msra.mxu0 %v2162
    %2465 = vmatpush.msra.mxu0 %v2158
    %2466 = vmatmul.f32.gmra.mxu0 %v1963
    %v2467 = vpop.f32.mrf.mxu0
    %v2468 = vadd.f32 %v2448, %v2467
    %2469 = vdwg.mxu0
    %2470 = vmatpush.msra.mxu0 %v2027
    %2471 = vmatpush.msra.mxu0 %v2023
    %2472 = vmatpush.msra.mxu0 %v2019
    %2473 = vmatpush.msra.mxu0 %v2015
    %2474 = vmatpush.msra.mxu0 %v2011
    %2475 = vmatpush.msra.mxu0 %v2007
    %2476 = vmatpush.msra.mxu0 %v2003
    %2477 = vmatpush.msra.mxu0 %v1999
    %2478 = vmatpush.msra.mxu0 %v1995
    %2479 = vmatpush.msra.mxu0 %v1991
    %2480 = vmatpush.msra.mxu0 %v1987
    %2481 = vmatpush.msra.mxu0 %v1983
    %2482 = vmatpush.msra.mxu0 %v1979
    %2483 = vmatpush.msra.mxu0 %v1975
    %2484 = vmatpush.msra.mxu0 %v1971
    %2485 = vmatpush.msra.mxu0 %v1967
    %2486 = vmatmul.f32.gmra.mxu0 %v1960
    %v2487 = vpop.f32.mrf.mxu0
    %v2488 = vadd.f32 %v2225, %v2487
    %2489 = vdwg.mxu0
    %2490 = vmatpush.msra.mxu0 %v2091
    %2491 = vmatpush.msra.mxu0 %v2087
    %2492 = vmatpush.msra.mxu0 %v2083
    %2493 = vmatpush.msra.mxu0 %v2079
    %2494 = vmatpush.msra.mxu0 %v2075
    %2495 = vmatpush.msra.mxu0 %v2071
    %2496 = vmatpush.msra.mxu0 %v2067
    %2497 = vmatpush.msra.mxu0 %v2063
    %2498 = vmatpush.msra.mxu0 %v2059
    %2499 = vmatpush.msra.mxu0 %v2055
    %2500 = vmatpush.msra.mxu0 %v2051
    %2501 = vmatpush.msra.mxu0 %v2047
    %2502 = vmatpush.msra.mxu0 %v2043
    %2503 = vmatpush.msra.mxu0 %v2039
    %2504 = vmatpush.msra.mxu0 %v2035
    %2505 = vmatpush.msra.mxu0 %v2031
    %2506 = vmatmul.f32.gmra.mxu0 %v1961
    %v2507 = vpop.f32.mrf.mxu0
    %v2508 = vadd.f32 %v2488, %v2507
    %2509 = vdwg.mxu0
    %2510 = vmatpush.msra.mxu0 %v2155
    %2511 = vmatpush.msra.mxu0 %v2151
    %2512 = vmatpush.msra.mxu0 %v2147
    %2513 = vmatpush.msra.mxu0 %v2143
    %2514 = vmatpush.msra.mxu0 %v2139
    %2515 = vmatpush.msra.mxu0 %v2135
    %2516 = vmatpush.msra.mxu0 %v2131
    %2517 = vmatpush.msra.mxu0 %v2127
    %2518 = vmatpush.msra.mxu0 %v2123
    %2519 = vmatpush.msra.mxu0 %v2119
    %2520 = vmatpush.msra.mxu0 %v2115
    %2521 = vmatpush.msra.mxu0 %v2111
    %2522 = vmatpush.msra.mxu0 %v2107
    %2523 = vmatpush.msra.mxu0 %v2103
    %2524 = vmatpush.msra.mxu0 %v2099
    %2525 = vmatpush.msra.mxu0 %v2095
    %2526 = vmatmul.f32.gmra.mxu0 %v1962
    %v2527 = vpop.f32.mrf.mxu0
    %v2528 = vadd.f32 %v2508, %v2527
    %2529 = vdwg.mxu0
    %2530 = vmatpush.msra.mxu0 %v2219
    %2531 = vmatpush.msra.mxu0 %v2215
    %2532 = vmatpush.msra.mxu0 %v2211
    %2533 = vmatpush.msra.mxu0 %v2207
    %2534 = vmatpush.msra.mxu0 %v2203
    %2535 = vmatpush.msra.mxu0 %v2199
    %2536 = vmatpush.msra.mxu0 %v2195
    %2537 = vmatpush.msra.mxu0 %v2191
    %2538 = vmatpush.msra.mxu0 %v2187
    %2539 = vmatpush.msra.mxu0 %v2183
    %2540 = vmatpush.msra.mxu0 %v2179
    %2541 = vmatpush.msra.mxu0 %v2175
    %2542 = vmatpush.msra.mxu0 %v2171
    %2543 = vmatpush.msra.mxu0 %v2167
    %2544 = vmatpush.msra.mxu0 %v2163
    %2545 = vmatpush.msra.mxu0 %v2159
    %2546 = vmatmul.f32.gmra.mxu0 %v1963
    %v2547 = vpop.f32.mrf.mxu0
    %v2548 = vadd.f32 %v2528, %v2547
    %2549 = vdwg.mxu0
    %v2550 = vmax.f32 %v2308, 0.0
    %v2551 = vmax.f32 %v2388, 0.0
    %v2552 = vmax.f32 %v2468, 0.0
    %v2553 = vmax.f32 %v2548, 0.0
    %v2554 = vld [vmem:[%s11] sm:$0xff]
    %v2555 = vld [vmem:[%s11 + $0x8] sm:$0xff]
    %v2556 = vld [vmem:[%s11 + $0x10] sm:$0xff]
    %v2557 = vld [vmem:[%s11 + $0x18] sm:$0xff]
    %v2558 = vld [vmem:[%s11 + $0x20] sm:$0xff]
    %v2559 = vld [vmem:[%s11 + $0x28] sm:$0xff]
    %v2560 = vld [vmem:[%s11 + $0x30] sm:$0xff]
    %v2561 = vld [vmem:[%s11 + $0x38] sm:$0xff]
    %v2562 = vld [vmem:[%s11 + $0x40] sm:$0xff]
    %v2563 = vld [vmem:[%s11 + $0x48] sm:$0xff]
    %v2564 = vld [vmem:[%s11 + $0x50] sm:$0xff]
    %v2565 = vld [vmem:[%s11 + $0x58] sm:$0xff]
    %v2566 = vld [vmem:[%s11 + $0x60] sm:$0xff]
    %v2567 = vld [vmem:[%s11 + $0x68] sm:$0xff]
    %v2568 = vld [vmem:[%s11 + $0x70] sm:$0xff]
    %v2569 = vld [vmem:[%s11 + $0x78] sm:$0xff]
    %v2570 = vld [vmem:[%s11 + $0x80] sm:$0xff]
    %v2571 = vld [vmem:[%s11 + $0x88] sm:$0xff]
    %v2572 = vld [vmem:[%s11 + $0x90] sm:$0xff]
    %v2573 = vld [vmem:[%s11 + $0x98] sm:$0xff]
    %v2574 = vld [vmem:[%s11 + $0xa0] sm:$0xff]
    %v2575 = vld [vmem:[%s11 + $0xa8] sm:$0xff]
    %v2576 = vld [vmem:[%s11 + $0xb0] sm:$0xff]
    %v2577 = vld [vmem:[%s11 + $0xb8] sm:$0xff]
    %v2578 = vld [vmem:[%s11 + $0xc0] sm:$0xff]
    %v2579 = vld [vmem:[%s11 + $0xc8] sm:$0xff]
    %v2580 = vld [vmem:[%s11 + $0xd0] sm:$0xff]
    %v2581 = vld [vmem:[%s11 + $0xd8] sm:$0xff]
    %v2582 = vld [vmem:[%s11 + $0xe0] sm:$0xff]
    %v2583 = vld [vmem:[%s11 + $0xe8] sm:$0xff]
    %v2584 = vld [vmem:[%s11 + $0xf0] sm:$0xff]
    %v2585 = vld [vmem:[%s11 + $0xf8] sm:$0xff]
    %v2586 = vld [vmem:[%s11 + $0x100] sm:$0xff]
    %v2587 = vld [vmem:[%s11 + $0x108] sm:$0xff]
    %v2588 = vld [vmem:[%s11 + $0x110] sm:$0xff]
    %v2589 = vld [vmem:[%s11 + $0x118] sm:$0xff]
    %v2590 = vld [vmem:[%s11 + $0x120] sm:$0xff]
    %v2591 = vld [vmem:[%s11 + $0x128] sm:$0xff]
    %v2592 = vld [vmem:[%s11 + $0x130] sm:$0xff]
    %v2593 = vld [vmem:[%s11 + $0x138] sm:$0xff]
    %v2594 = vld [vmem:[%s11 + $0x140] sm:$0xff]
    %v2595 = vld [vmem:[%s11 + $0x148] sm:$0xff]
    %v2596 = vld [vmem:[%s11 + $0x150] sm:$0xff]
    %v2597 = vld [vmem:[%s11 + $0x158] sm:$0xff]
    %v2598 = vld [vmem:[%s11 + $0x160] sm:$0xff]
    %v2599 = vld [vmem:[%s11 + $0x168] sm:$0xff]
    %v2600 = vld [vmem:[%s11 + $0x170] sm:$0xff]
    %v2601 = vld [vmem:[%s11 + $0x178] sm:$0xff]
    %v2602 = vld [vmem:[%s11 + $0x180] sm:$0xff]
    %v2603 = vld [vmem:[%s11 + $0x188] sm:$0xff]
    %v2604 = vld [vmem:[%s11 + $0x190] sm:$0xff]
    %v2605 = vld [vmem:[%s11 + $0x198] sm:$0xff]
    %v2606 = vld [vmem:[%s11 + $0x1a0] sm:$0xff]
    %v2607 = vld [vmem:[%s11 + $0x1a8] sm:$0xff]
    %v2608 = vld [vmem:[%s11 + $0x1b0] sm:$0xff]
    %v2609 = vld [vmem:[%s11 + $0x1b8] sm:$0xff]
    %v2610 = vld [vmem:[%s11 + $0x1c0] sm:$0xff]
    %v2611 = vld [vmem:[%s11 + $0x1c8] sm:$0xff]
    %v2612 = vld [vmem:[%s11 + $0x1d0] sm:$0xff]
    %v2613 = vld [vmem:[%s11 + $0x1d8] sm:$0xff]
    %v2614 = vld [vmem:[%s11 + $0x1e0] sm:$0xff]
    %v2615 = vld [vmem:[%s11 + $0x1e8] sm:$0xff]
    %v2616 = vld [vmem:[%s11 + $0x1f0] sm:$0xff]
    %v2617 = vld [vmem:[%s11 + $0x1f8] sm:$0xff]
    %v2618 = vld [vmem:[#allocation11] sm:$0x1]
    %v2620 = vperm.slane %v2618, 0
    %2622 = vmatpush.msra.mxu0 %v2569
    %2623 = vmatpush.msra.mxu0 %v2568
    %2624 = vmatpush.msra.mxu0 %v2567
    %2625 = vmatpush.msra.mxu0 %v2566
    %2626 = vmatpush.msra.mxu0 %v2565
    %2627 = vmatpush.msra.mxu0 %v2564
    %2628 = vmatpush.msra.mxu0 %v2563
    %2629 = vmatpush.msra.mxu0 %v2562
    %2630 = vmatpush.msra.mxu0 %v2561
    %2631 = vmatpush.msra.mxu0 %v2560
    %2632 = vmatpush.msra.mxu0 %v2559
    %2633 = vmatpush.msra.mxu0 %v2558
    %2634 = vmatpush.msra.mxu0 %v2557
    %2635 = vmatpush.msra.mxu0 %v2556
    %2636 = vmatpush.msra.mxu0 %v2555
    %2637 = vmatpush.msra.mxu0 %v2554
    %2638 = vmatmul.f32.gmra.mxu0 %v2550
    %v2639 = vpop.f32.mrf.mxu0
    %v2640 = vadd.f32 %v2620, %v2639
    %2641 = vdwg.mxu0
    %2642 = vmatpush.msra.mxu0 %v2585
    %2643 = vmatpush.msra.mxu0 %v2584
    %2644 = vmatpush.msra.mxu0 %v2583
    %2645 = vmatpush.msra.mxu0 %v2582
    %2646 = vmatpush.msra.mxu0 %v2581
    %2647 = vmatpush.msra.mxu0 %v2580
    %2648 = vmatpush.msra.mxu0 %v2579
    %2649 = vmatpush.msra.mxu0 %v2578
    %2650 = vmatpush.msra.mxu0 %v2577
    %2651 = vmatpush.msra.mxu0 %v2576
    %2652 = vmatpush.msra.mxu0 %v2575
    %2653 = vmatpush.msra.mxu0 %v2574
    %2654 = vmatpush.msra.mxu0 %v2573
    %2655 = vmatpush.msra.mxu0 %v2572
    %2656 = vmatpush.msra.mxu0 %v2571
    %2657 = vmatpush.msra.mxu0 %v2570
    %2658 = vmatmul.f32.gmra.mxu0 %v2551
    %v2659 = vpop.f32.mrf.mxu0
    %v2660 = vadd.f32 %v2640, %v2659
    %2661 = vdwg.mxu0
    %2662 = vmatpush.msra.mxu0 %v2601
    %2663 = vmatpush.msra.mxu0 %v2600
    %2664 = vmatpush.msra.mxu0 %v2599
    %2665 = vmatpush.msra.mxu0 %v2598
    %2666 = vmatpush.msra.mxu0 %v2597
    %2667 = vmatpush.msra.mxu0 %v2596
    %2668 = vmatpush.msra.mxu0 %v2595
    %2669 = vmatpush.msra.mxu0 %v2594
    %2670 = vmatpush.msra.mxu0 %v2593
    %2671 = vmatpush.msra.mxu0 %v2592
    %2672 = vmatpush.msra.mxu0 %v2591
    %2673 = vmatpush.msra.mxu0 %v2590
    %2674 = vmatpush.msra.mxu0 %v2589
    %2675 = vmatpush.msra.mxu0 %v2588
    %2676 = vmatpush.msra.mxu0 %v2587
    %2677 = vmatpush.msra.mxu0 %v2586
    %2678 = vmatmul.f32.gmra.mxu0 %v2552
    %v2679 = vpop.f32.mrf.mxu0
    %v2680 = vadd.f32 %v2660, %v2679
    %2681 = vdwg.mxu0
    %2682 = vmatpush.msra.mxu0 %v2617
    %2683 = vmatpush.msra.mxu0 %v2616
    %2684 = vmatpush.msra.mxu0 %v2615
    %2685 = vmatpush.msra.mxu0 %v2614
    %2686 = vmatpush.msra.mxu0 %v2613
    %2687 = vmatpush.msra.mxu0 %v2612
    %2688 = vmatpush.msra.mxu0 %v2611
    %2689 = vmatpush.msra.mxu0 %v2610
    %2690 = vmatpush.msra.mxu0 %v2609
    %2691 = vmatpush.msra.mxu0 %v2608
    %2692 = vmatpush.msra.mxu0 %v2607
    %2693 = vmatpush.msra.mxu0 %v2606
    %2694 = vmatpush.msra.mxu0 %v2605
    %2695 = vmatpush.msra.mxu0 %v2604
    %2696 = vmatpush.msra.mxu0 %v2603
    %2697 = vmatpush.msra.mxu0 %v2602
    %2698 = vmatmul.f32.gmra.mxu0 %v2553
    %v2699 = vpop.f32.mrf.mxu0
    %v2700 = vadd.f32 %v2680, %v2699
    %2701 = vdwg.mxu0
    %2702 = vst [vmem:[#allocation13] sm:$0xff] %v2700
    // Predicated region
    $region78: #{tpu_custom_call.1} parent=1 // pred_check
      _
    $region79: #{tpu_custom_call.1} parent=1 // pred_check_branch
      %2704 = sbr.rel (0) target = $region81
    $region80: #{tpu_custom_call.1} parent=1 // pred_region
      %2706 = vsyncadd [#allocation4], 0
      %s2708 = sshll.u32 [#allocation13], 4
      %s2709 = int_to_ptr.vmem [resolvable:$true] %s2708
      %s2710 = sshll.u32 %s13, 4
      %s2711 = int_to_ptr.hbm [resolvable:$true] %s2710
      %2713 = dma.vmem_to_hbm [thread:$0]  %s2709, 128, %s2711, [#allocation4]
    $region81: #{tpu_custom_call.1} parent=1 // pred_fallthru
      _
    // Predicated region
    $region82: #{tpu_custom_call.1} parent=1 // pred_check
      _
    $region83: #{tpu_custom_call.1} parent=1 // pred_check_branch
      %2715 = sbr.rel (0) target = $region85
    $region84: #{tpu_custom_call.1} parent=1 // pred_region
      %2717 = dma.done [#allocation4], 128
    $region85: #{tpu_custom_call.1} parent=1 // pred_fallthru
      _
    %2718 = vsyncpa [#allocation3], 1
    %2719 = vsyncpa [#allocation6], 1
    %2720 = vsyncpa [#allocation9], 1
    %2721 = vsyncpa [#allocation12], 1
    %2722 = vsyncpa [#allocation4], 1

</llo_original>
